<compile_context>
chip_gen: v7x
topology: tpu7x:2x2x1
jax: 0.10.0
libtpu: 0.0.40
codegen_flags: <defaults>
</compile_context>

<pallas_src>
import functools

import jax
import jax.numpy as jnp
from jax.experimental import pallas as pl
from jax.experimental.pallas import tpu as pltpu


def _round_up(x, m):
    return (x + m - 1) // m * m


def cnn_text_kernel(TN, Lp, D, NC, CP, Kmax, lchunk,
                    x_ref, w_ref, b_ref, len_ref, fcw_ref, fcb_ref, out_ref):
    """One batch tile: shifted-slice conv -> masked running max -> bias+ReLU -> FC."""
    NEG = jnp.float32(-1e30)
    lens = len_ref[...]                                     # (1, NC) int32 valid length/lane
    pooled = jnp.full((TN, NC), NEG, jnp.float32)           # running max of raw pre-acts

    # Uniform position chunks (Lp is a multiple of lchunk).
    # TODO(synk): for very long sequences convert this static unroll to
    #             lax.fori_loop with pl.ds starts.
    for c0 in range(0, Lp, lchunk):
        acc = jnp.zeros((TN * lchunk, NC), jnp.float32)
        for k in range(Kmax):                                # shifted-slice conv
            xk = x_ref[:, c0 + k:c0 + k + lchunk, :].reshape(TN * lchunk, D)
            acc = acc + jnp.dot(xk, w_ref[k], preferred_element_type=jnp.float32)
        acc = acc.reshape(TN, lchunk, NC)
        # in-kernel validity mask: position < (L - K + 1) for that branch's lanes
        pos = c0 + jax.lax.broadcasted_iota(jnp.int32, (lchunk, NC), 0)
        msk = jnp.where(pos < lens, jnp.float32(0.0), NEG)   # (lchunk, NC) additive
        pooled = jnp.maximum(pooled, jnp.max(acc + msk[None, :, :], axis=1))

    # Epilogue: bias + ReLU once on the pooled tile (max/ReLU/bias commute since
    # the bias is constant over positions), then the fused FC.
    feats = jnp.maximum(pooled + b_ref[...], 0.0)            # (TN, NC) f32
    out_ref[...] = (jnp.dot(feats.astype(jnp.bfloat16), fcw_ref[...],
                            preferred_element_type=jnp.float32) + fcb_ref[...])


def cnn_text_forward(x_tokens, params, Ks, *, tn=64, lchunk=128):
    """x_tokens: (N, L) int32 token ids -> (N, C) f32 logits."""
    embed = params["embed"]                                  # (V, D) f32
    N, L = x_tokens.shape
    D = embed.shape[1]
    Co = params["conv_w"][0].shape[2]
    C = params["fc_b"].shape[1]
    n_k = len(Ks)
    Kmax, Kmin = max(Ks), min(Ks)

    # ---- glue: embedding gather + per-forward max_norm=10 renorm ------------
    rows = jnp.take(embed, x_tokens, axis=0)                 # (N, L, D)
    norm = jnp.linalg.norm(rows, axis=-1, keepdims=True)
    x_emb = rows * jnp.minimum(1.0, 10.0 / jnp.maximum(norm, 1e-7))
    # (dropout = identity, eval mode)

    # ---- position padding: uniform chunks -----------------------------------
    Lout_max = L - Kmin + 1
    lchunk = max(8, _round_up(min(lchunk, _round_up(Lout_max, 8)), 8))
    Lp = _round_up(Lout_max, lchunk)                         # pooled positions
    Lpad = Lp + Kmax - 1                                     # raw positions the kernel reads
    x_emb = jnp.pad(x_emb, ((0, 0), (0, Lpad - L), (0, 0))).astype(jnp.bfloat16)

    # ---- lane padding for conv outputs and classes ---------------------------
    NC = _round_up(n_k * Co, 128)
    if NC > 128:                                             # 256-align for v6e/v7x MXU
        NC = _round_up(NC, 256)
    CP = _round_up(C, 128)

    # ---- batch tile derived from VMEM capacity --------------------------------
    try:
        vmem_cap = int(getattr(pltpu.get_tpu_info(), "vmem_capacity_bytes", 64 << 20))
    except Exception:
        vmem_cap = 64 << 20                                  # safe on v5e/v6e/v7x
    # per batch-row VMEM that scales with TN: double-buffered bf16 input block,
    # the f32 pre-activation chunk (+ temp), and the double-buffered f32 output.
    per_row = 2 * (Lpad * D * 2) + 2 * (lchunk * NC * 4) + 2 * (CP * 4)
    budget = int(vmem_cap * 0.4)
    max_tn = max(8, (budget // max(per_row, 1)) // 8 * 8)
    TN = int(max(8, min(tn, max_tn, _round_up(N, 8)) // 8 * 8))
    Np = _round_up(N, TN)
    x_emb = jnp.pad(x_emb, ((0, Np - N), (0, 0), (0, 0)))

    # ---- pack conv branches along the output-lane axis ------------------------
    w_pack = jnp.zeros((Kmax, D, NC), jnp.float32)           # per-tap weights
    b_pack = jnp.zeros((1, NC), jnp.float32)
    lens = jnp.zeros((1, NC), jnp.int32)                     # valid length per lane
    fcw = jnp.zeros((NC, CP), jnp.float32)
    for i, K in enumerate(Ks):
        w_i = params["conv_w"][i]                            # (K, D, Co)
        w_pack = w_pack.at[:K, :, i * Co:(i + 1) * Co].set(w_i)
        b_pack = b_pack.at[:, i * Co:(i + 1) * Co].set(params["conv_b"][i])
        lens = lens.at[:, i * Co:(i + 1) * Co].set(L - K + 1)
        fcw = fcw.at[i * Co:(i + 1) * Co, :C].set(params["fc_w"][i * Co:(i + 1) * Co, :])
    fcb = jnp.zeros((1, CP), jnp.float32).at[:, :C].set(params["fc_b"])
    w_pack = w_pack.astype(jnp.bfloat16)
    fcw = fcw.astype(jnp.bfloat16)

    kernel = functools.partial(cnn_text_kernel, TN, Lp, D, NC, CP, Kmax, lchunk)

    resident = Kmax * D * NC * 2 + NC * CP * 2 + 2 * NC * 4 + CP * 4
    est = TN * per_row + resident + (2 << 20)
    vmem_limit = int(min(vmem_cap, max(2 * est, 32 << 20)))

    out = pl.pallas_call(
        kernel,
        out_shape=jax.ShapeDtypeStruct((Np, CP), jnp.float32),
        grid=(Np // TN,),
        in_specs=[
            pl.BlockSpec((TN, Lpad, D), lambda i: (i, 0, 0)),   # batch-tiled input
            pl.BlockSpec((Kmax, D, NC), lambda i: (0, 0, 0)),   # resident conv weights
            pl.BlockSpec((1, NC), lambda i: (0, 0)),            # conv bias
            pl.BlockSpec((1, NC), lambda i: (0, 0)),            # per-lane valid lengths
            pl.BlockSpec((NC, CP), lambda i: (0, 0)),           # resident fc weights
            pl.BlockSpec((1, CP), lambda i: (0, 0)),            # fc bias
        ],
        out_specs=pl.BlockSpec((TN, CP), lambda i: (i, 0)),     # lane-dense output slab
        compiler_params=pltpu.CompilerParams(
            dimension_semantics=("parallel",),
            vmem_limit_bytes=vmem_limit),
    )(x_emb, w_pack, b_pack, lens, fcw, fcb)

    return out[:N, :C]


def cnn_text_reference(x_tokens, params, Ks):
    """Pure-JAX f32 reference (same math as the PyTorch forward, eval mode)."""
    rows = jnp.take(params["embed"], x_tokens, axis=0)
    norm = jnp.linalg.norm(rows, axis=-1, keepdims=True)
    x = rows * jnp.minimum(1.0, 10.0 / jnp.maximum(norm, 1e-7))     # (N, L, D)
    feats = []
    for i, K in enumerate(Ks):
        w = params["conv_w"][i]                      # (K, D, Co)
        b = params["conv_b"][i]                      # (1, Co)
        Lout = x.shape[1] - K + 1
        acc = jnp.zeros((x.shape[0], Lout, w.shape[2]), jnp.float32)
        for k in range(K):
            acc = acc + jnp.einsum("nld,dc->nlc", x[:, k:k + Lout, :], w[k])
        feats.append(jnp.max(jax.nn.relu(acc + b), axis=1))         # (N, Co)
    pooled = jnp.concatenate(feats, axis=1)                         # (N, len(Ks)*Co)
    return pooled @ params["fc_w"] + params["fc_b"]


def init_params(key, V, D, C, Co, Ks):
    n_keys = 1 + 2 * len(Ks) + 2
    keys = jax.random.split(key, n_keys)

    # Embedding: padding_idx=0 row zeroed; max_norm renorm happens per-forward.
    embed = jax.random.normal(keys[0], (V, D), jnp.float32) * 0.5
    embed = embed.at[0].set(0.0)

    conv_w, conv_b = [], []
    for i, K in enumerate(Ks):
        conv_w.append(jax.random.normal(keys[1 + 2 * i], (K, D, Co), jnp.float32) * 0.1)
        conv_b.append(jax.random.normal(keys[2 + 2 * i], (1, Co), jnp.float32) * 0.1)

    fc_w = jax.random.normal(keys[1 + 2 * len(Ks)], (len(Ks) * Co, C), jnp.float32) * 0.1
    fc_b = jax.random.normal(keys[2 + 2 * len(Ks)], (1, C), jnp.float32) * 0.1

    return dict(embed=embed, conv_w=conv_w, conv_b=conv_b, fc_w=fc_w, fc_b=fc_b)


if __name__ == "__main__":
    # args: embed_num=64, embed_dim=32, class_num=4, kernel_num=8, kernel_sizes=(3,4,5)
    V, D, C, Co = 64, 32, 4, 8
    Ks = (3, 4, 5)
    N, L = 2, 16

    root = jax.random.PRNGKey(0)
    pkey, tkey = jax.random.split(root)
    params = init_params(pkey, V, D, C, Co, Ks)
    x_tokens = jax.random.randint(tkey, (N, L), 0, V, dtype=jnp.int32)

    logits = cnn_text_forward(x_tokens, params, Ks)
    jax.block_until_ready(logits)

    assert logits.shape == (N, C) and logits.dtype == jnp.float32
    ref = cnn_text_reference(x_tokens, params, Ks)
    # NOTE: matmul operands are bf16 in the kernel (reference is f32), hence the
    # loose tolerance; accumulation is f32 throughout.
    assert jnp.allclose(logits, ref, atol=1e-1, rtol=5e-2), (logits, ref)
    print("KERNEL_OK")
</pallas_src>

<mosaic_0001>
module attributes {stable_mosaic.version = 11 : i64} {
  func.func @cnn_text_kernel(%arg0: i32, %arg1: memref<8x20x32xbf16, #tpu.memory_space<vmem>>, %arg2: memref<5x32x128xbf16, #tpu.memory_space<vmem>>, %arg3: memref<1x128xf32, #tpu.memory_space<vmem>>, %arg4: memref<1x128xi32, #tpu.memory_space<vmem>>, %arg5: memref<128x128xbf16, #tpu.memory_space<vmem>>, %arg6: memref<1x128xf32, #tpu.memory_space<vmem>>, %arg7: memref<8x128xf32, #tpu.memory_space<vmem>>) attributes {dimension_semantics = [#tpu.dimension_semantics<parallel>], iteration_bounds = array<i64: 1>, scalar_prefetch = 0 : i64, scratch_operands = 0 : i64, tpu.core_type = #tpu.core_type<tc>, window_params = [{transform_indices = @transform_0, window_bounds = array<i64: 8, 20, 32>}, {pipeline_mode = #tpu.pipeline_mode<synchronous>, transform_indices = @transform_1, window_bounds = array<i64: 5, 32, 128>}, {pipeline_mode = #tpu.pipeline_mode<synchronous>, transform_indices = @transform_2, window_bounds = array<i64: 1, 128>}, {pipeline_mode = #tpu.pipeline_mode<synchronous>, transform_indices = @transform_3, window_bounds = array<i64: 1, 128>}, {pipeline_mode = #tpu.pipeline_mode<synchronous>, transform_indices = @transform_4, window_bounds = array<i64: 128, 128>}, {pipeline_mode = #tpu.pipeline_mode<synchronous>, transform_indices = @transform_5, window_bounds = array<i64: 1, 128>}, {transform_indices = @transform_6, window_bounds = array<i64: 8, 128>}]} {
    %c0 = arith.constant 0 : index
    %c0_0 = arith.constant 0 : index
    %0 = vector.load %arg4[%c0, %c0_0] : memref<1x128xi32, #tpu.memory_space<vmem>>, vector<1x128xi32>
    %cst = arith.constant -1.000000e+30 : f32
    %1 = vector.broadcast %cst : f32 to vector<8x128xf32>
    %cst_1 = arith.constant 0.000000e+00 : f32
    %2 = vector.broadcast %cst_1 : f32 to vector<128x128xf32>
    %c0_2 = arith.constant 0 : index
    %c0_3 = arith.constant 0 : index
    %c0_4 = arith.constant 0 : index
    %3 = vector.load %arg1[%c0_2, %c0_3, %c0_4] : memref<8x20x32xbf16, #tpu.memory_space<vmem>>, vector<8x16x32xbf16>
    %4 = vector.shape_cast %3 : vector<8x16x32xbf16> to vector<128x32xbf16>
    %c0_5 = arith.constant 0 : index
    %c0_6 = arith.constant 0 : index
    %c0_7 = arith.constant 0 : index
    %5 = vector.load %arg2[%c0_5, %c0_6, %c0_7] : memref<5x32x128xbf16, #tpu.memory_space<vmem>>, vector<1x32x128xbf16>
    %6 = vector.shape_cast %5 : vector<1x32x128xbf16> to vector<32x128xbf16>
    %cst_8 = arith.constant dense<0.000000e+00> : vector<128x128xf32>
    %7 = tpu.matmul %4, %6, %cst_8 {dimension_numbers = #tpu.dot_dimension_numbers<[1], [0], [0], [1], [0, 0, 1, 1], [], []>} : vector<128x32xbf16>, vector<32x128xbf16>, vector<128x128xf32> -> vector<128x128xf32>
    %8 = arith.addf %2, %7 : vector<128x128xf32>
    %c0_9 = arith.constant 0 : index
    %c1 = arith.constant 1 : index
    %c0_10 = arith.constant 0 : index
    %9 = vector.load %arg1[%c0_9, %c1, %c0_10] : memref<8x20x32xbf16, #tpu.memory_space<vmem>>, vector<8x16x32xbf16>
    %10 = vector.shape_cast %9 : vector<8x16x32xbf16> to vector<128x32xbf16>
    %c1_11 = arith.constant 1 : index
    %c0_12 = arith.constant 0 : index
    %c0_13 = arith.constant 0 : index
    %11 = vector.load %arg2[%c1_11, %c0_12, %c0_13] : memref<5x32x128xbf16, #tpu.memory_space<vmem>>, vector<1x32x128xbf16>
    %12 = vector.shape_cast %11 : vector<1x32x128xbf16> to vector<32x128xbf16>
    %cst_14 = arith.constant dense<0.000000e+00> : vector<128x128xf32>
    %13 = tpu.matmul %10, %12, %cst_14 {dimension_numbers = #tpu.dot_dimension_numbers<[1], [0], [0], [1], [0, 0, 1, 1], [], []>} : vector<128x32xbf16>, vector<32x128xbf16>, vector<128x128xf32> -> vector<128x128xf32>
    %14 = arith.addf %8, %13 : vector<128x128xf32>
    %c0_15 = arith.constant 0 : index
    %c2 = arith.constant 2 : index
    %c0_16 = arith.constant 0 : index
    %15 = vector.load %arg1[%c0_15, %c2, %c0_16] : memref<8x20x32xbf16, #tpu.memory_space<vmem>>, vector<8x16x32xbf16>
    %16 = vector.shape_cast %15 : vector<8x16x32xbf16> to vector<128x32xbf16>
    %c2_17 = arith.constant 2 : index
    %c0_18 = arith.constant 0 : index
    %c0_19 = arith.constant 0 : index
    %17 = vector.load %arg2[%c2_17, %c0_18, %c0_19] : memref<5x32x128xbf16, #tpu.memory_space<vmem>>, vector<1x32x128xbf16>
    %18 = vector.shape_cast %17 : vector<1x32x128xbf16> to vector<32x128xbf16>
    %cst_20 = arith.constant dense<0.000000e+00> : vector<128x128xf32>
    %19 = tpu.matmul %16, %18, %cst_20 {dimension_numbers = #tpu.dot_dimension_numbers<[1], [0], [0], [1], [0, 0, 1, 1], [], []>} : vector<128x32xbf16>, vector<32x128xbf16>, vector<128x128xf32> -> vector<128x128xf32>
    %20 = arith.addf %14, %19 : vector<128x128xf32>
    %c0_21 = arith.constant 0 : index
    %c3 = arith.constant 3 : index
    %c0_22 = arith.constant 0 : index
    %21 = vector.load %arg1[%c0_21, %c3, %c0_22] : memref<8x20x32xbf16, #tpu.memory_space<vmem>>, vector<8x16x32xbf16>
    %22 = vector.shape_cast %21 : vector<8x16x32xbf16> to vector<128x32xbf16>
    %c3_23 = arith.constant 3 : index
    %c0_24 = arith.constant 0 : index
    %c0_25 = arith.constant 0 : index
    %23 = vector.load %arg2[%c3_23, %c0_24, %c0_25] : memref<5x32x128xbf16, #tpu.memory_space<vmem>>, vector<1x32x128xbf16>
    %24 = vector.shape_cast %23 : vector<1x32x128xbf16> to vector<32x128xbf16>
    %cst_26 = arith.constant dense<0.000000e+00> : vector<128x128xf32>
    %25 = tpu.matmul %22, %24, %cst_26 {dimension_numbers = #tpu.dot_dimension_numbers<[1], [0], [0], [1], [0, 0, 1, 1], [], []>} : vector<128x32xbf16>, vector<32x128xbf16>, vector<128x128xf32> -> vector<128x128xf32>
    %26 = arith.addf %20, %25 : vector<128x128xf32>
    %c0_27 = arith.constant 0 : index
    %c4 = arith.constant 4 : index
    %c0_28 = arith.constant 0 : index
    %27 = vector.load %arg1[%c0_27, %c4, %c0_28] : memref<8x20x32xbf16, #tpu.memory_space<vmem>>, vector<8x16x32xbf16>
    %28 = vector.shape_cast %27 : vector<8x16x32xbf16> to vector<128x32xbf16>
    %c4_29 = arith.constant 4 : index
    %c0_30 = arith.constant 0 : index
    %c0_31 = arith.constant 0 : index
    %29 = vector.load %arg2[%c4_29, %c0_30, %c0_31] : memref<5x32x128xbf16, #tpu.memory_space<vmem>>, vector<1x32x128xbf16>
    %30 = vector.shape_cast %29 : vector<1x32x128xbf16> to vector<32x128xbf16>
    %cst_32 = arith.constant dense<0.000000e+00> : vector<128x128xf32>
    %31 = tpu.matmul %28, %30, %cst_32 {dimension_numbers = #tpu.dot_dimension_numbers<[1], [0], [0], [1], [0, 0, 1, 1], [], []>} : vector<128x32xbf16>, vector<32x128xbf16>, vector<128x128xf32> -> vector<128x128xf32>
    %32 = arith.addf %26, %31 : vector<128x128xf32>
    %33 = vector.shape_cast %32 : vector<128x128xf32> to vector<8x16x128xf32>
    %34 = tpu.iota {dimensions = array<i32: 0>} : vector<16x128xi32>
    %c0_i32 = arith.constant 0 : i32
    %35 = vector.broadcast %c0_i32 : i32 to vector<16x128xi32>
    %36 = arith.addi %35, %34 : vector<16x128xi32>
    %37 = vector.broadcast %0 : vector<1x128xi32> to vector<16x128xi32>
    %38 = arith.cmpi slt, %36, %37 : vector<16x128xi32>
    %cst_33 = arith.constant 0.000000e+00 : f32
    %cst_34 = arith.constant -1.000000e+30 : f32
    %39 = vector.broadcast %cst_33 : f32 to vector<16x128xf32>
    %40 = vector.broadcast %cst_34 : f32 to vector<16x128xf32>
    %41 = arith.select %38, %39, %40 : vector<16x128xi1>, vector<16x128xf32>
    %42 = vector.shape_cast %41 : vector<16x128xf32> to vector<1x16x128xf32>
    %43 = vector.broadcast %42 : vector<1x16x128xf32> to vector<8x16x128xf32>
    %44 = arith.addf %33, %43 : vector<8x16x128xf32>
    %cst_35 = arith.constant dense<0xFF800000> : vector<8x128xf32>
    %45 = vector.multi_reduction <maximumf>, %44, %cst_35 [1] : vector<8x16x128xf32> to vector<8x128xf32>
    %46 = arith.maximumf %1, %45 : vector<8x128xf32>
    %c0_36 = arith.constant 0 : index
    %c0_37 = arith.constant 0 : index
    %47 = vector.load %arg3[%c0_36, %c0_37] : memref<1x128xf32, #tpu.memory_space<vmem>>, vector<1x128xf32>
    %48 = vector.broadcast %47 : vector<1x128xf32> to vector<8x128xf32>
    %49 = arith.addf %46, %48 : vector<8x128xf32>
    %cst_38 = arith.constant 0.000000e+00 : f32
    %50 = vector.broadcast %cst_38 : f32 to vector<8x128xf32>
    %51 = arith.maximumf %49, %50 : vector<8x128xf32>
    %52 = arith.truncf %51 : vector<8x128xf32> to vector<8x128xbf16>
    %c0_39 = arith.constant 0 : index
    %c0_40 = arith.constant 0 : index
    %53 = vector.load %arg5[%c0_39, %c0_40] : memref<128x128xbf16, #tpu.memory_space<vmem>>, vector<128x128xbf16>
    %cst_41 = arith.constant dense<0.000000e+00> : vector<8x128xf32>
    %54 = tpu.matmul %52, %53, %cst_41 {dimension_numbers = #tpu.dot_dimension_numbers<[1], [0], [0], [1], [0, 0, 1, 1], [], []>} : vector<8x128xbf16>, vector<128x128xbf16>, vector<8x128xf32> -> vector<8x128xf32>
    %c0_42 = arith.constant 0 : index
    %c0_43 = arith.constant 0 : index
    %55 = vector.load %arg6[%c0_42, %c0_43] : memref<1x128xf32, #tpu.memory_space<vmem>>, vector<1x128xf32>
    %56 = vector.broadcast %55 : vector<1x128xf32> to vector<8x128xf32>
    %57 = arith.addf %54, %56 : vector<8x128xf32>
    %c0_44 = arith.constant 0 : index
    %c0_45 = arith.constant 0 : index
    %58 = vector.load %arg7[%c0_44, %c0_45] : memref<8x128xf32, #tpu.memory_space<vmem>>, vector<8x128xf32>
    tpu.vector_store %arg7[%c0_44, %c0_45], %57 {strides = array<i32>} : memref<8x128xf32, #tpu.memory_space<vmem>>, vector<8x128xf32>,
    return
  }
  func.func @transform_0(%arg0: i32) -> (i32, i32, i32) {
    %c0_i32 = arith.constant 0 : i32
    %c0_i32_0 = arith.constant 0 : i32
    %c0_i32_1 = arith.constant 0 : i32
    return %arg0, %c0_i32, %c0_i32_0 : i32, i32, i32
  }
  func.func @transform_1(%arg0: i32) -> (i32, i32, i32) {
    %c0_i32 = arith.constant 0 : i32
    %c0_i32_0 = arith.constant 0 : i32
    %c0_i32_1 = arith.constant 0 : i32
    %c0_i32_2 = arith.constant 0 : i32
    return %c0_i32, %c0_i32_0, %c0_i32_1 : i32, i32, i32
  }
  func.func @transform_2(%arg0: i32) -> (i32, i32) {
    %c0_i32 = arith.constant 0 : i32
    %c0_i32_0 = arith.constant 0 : i32
    %c0_i32_1 = arith.constant 0 : i32
    return %c0_i32, %c0_i32_0 : i32, i32
  }
  func.func @transform_3(%arg0: i32) -> (i32, i32) {
    %c0_i32 = arith.constant 0 : i32
    %c0_i32_0 = arith.constant 0 : i32
    %c0_i32_1 = arith.constant 0 : i32
    return %c0_i32, %c0_i32_0 : i32, i32
  }
  func.func @transform_4(%arg0: i32) -> (i32, i32) {
    %c0_i32 = arith.constant 0 : i32
    %c0_i32_0 = arith.constant 0 : i32
    %c0_i32_1 = arith.constant 0 : i32
    return %c0_i32, %c0_i32_0 : i32, i32
  }
  func.func @transform_5(%arg0: i32) -> (i32, i32) {
    %c0_i32 = arith.constant 0 : i32
    %c0_i32_0 = arith.constant 0 : i32
    %c0_i32_1 = arith.constant 0 : i32
    return %c0_i32, %c0_i32_0 : i32, i32
  }
  func.func @transform_6(%arg0: i32) -> (i32, i32) {
    %c0_i32 = arith.constant 0 : i32
    %c0_i32_0 = arith.constant 0 : i32
    return %arg0, %c0_i32 : i32, i32
  }
}

</mosaic_0001>

<llo_original>
// kernel: tpu_custom_call.1
$region0: #{tpu_custom_call.1}
  #allocation0 [shape = 'u32[]', space=smem, size = 0x4, offset = 0x4, fixed_abs, tag = 'smem constant byte address 0x4 - core index']
  #allocation1 [shape = 'u32[144,128]{1,0:T(1,128)}', space=vmem, size = 0x12000, scoped, tag = 'internal scratch']
  %s0 = inlined_call_operand.vmem [shape: bf16[8,20,32], index: 0, kind: input, shape index: {}]
  %s1 = inlined_call_operand.vmem [shape: bf16[5,32,128], index: 1, kind: input, shape index: {}]
  %s2 = inlined_call_operand.vmem [shape: f32[1,128], index: 2, kind: input, shape index: {}]
  %s3 = inlined_call_operand.vmem [shape: s32[1,128], index: 3, kind: input, shape index: {}]
  %s4 = inlined_call_operand.vmem [shape: bf16[128,128], index: 4, kind: input, shape index: {}]
  %s5 = inlined_call_operand.vmem [shape: f32[1,128], index: 5, kind: input, shape index: {}]
  %s6 = inlined_call_operand.hbm [shape: f32[8,128], index: 6, kind: output, shape index: {}]
  %s7 = sld [smem:[#allocation0]]
  $region34: #{tpu_custom_call.1} parent=0
    _
  %s9 = ssub.s32 1, %s7
  %s10 = scalar_select 0, %s9, %s7
  $region1: #{tpu_custom_call.1} parent=0
    #allocation2 [shape = 'u8[4096]{0}', space=vmem, size = 0x1000, scoped, tag = 'output window, operand 0, single buffered']
    #allocation3 [shape = 's32[1]{0}', space=sflag, size = 0x4, scoped, tag = 'scoped memory for tpu_custom_call.1']
    %11 = vsyncpa [#allocation3], 0
    // Predicated region
    $region2: #{tpu_custom_call.1} parent=1 // pred_check
      _
    $region3: #{tpu_custom_call.1} parent=1 // pred_check_branch
      %13 = sbr.rel (0) target = $region5
    $region4: #{tpu_custom_call.1} parent=1 // pred_region
      _
    $region5: #{tpu_custom_call.1} parent=1 // pred_fallthru
      _
    // Predicated region
    $region6: #{tpu_custom_call.1} parent=1 // pred_check
      _
    $region7: #{tpu_custom_call.1} parent=1 // pred_check_branch
      %15 = sbr.rel (0) target = $region9
    $region8: #{tpu_custom_call.1} parent=1 // pred_region
      _
    $region9: #{tpu_custom_call.1} parent=1 // pred_fallthru
      _
    // Predicated region
    $region10: #{tpu_custom_call.1} parent=1 // pred_check
      _
    $region11: #{tpu_custom_call.1} parent=1 // pred_check_branch
      %17 = sbr.rel (0) target = $region13
    $region12: #{tpu_custom_call.1} parent=1 // pred_region
      _
    $region13: #{tpu_custom_call.1} parent=1 // pred_fallthru
      _
    // Predicated region
    $region14: #{tpu_custom_call.1} parent=1 // pred_check
      _
    $region15: #{tpu_custom_call.1} parent=1 // pred_check_branch
      %19 = sbr.rel (0) target = $region17
    $region16: #{tpu_custom_call.1} parent=1 // pred_region
      _
    $region17: #{tpu_custom_call.1} parent=1 // pred_fallthru
      _
    // Predicated region
    $region18: #{tpu_custom_call.1} parent=1 // pred_check
      _
    $region19: #{tpu_custom_call.1} parent=1 // pred_check_branch
      %21 = sbr.rel (0) target = $region21
    $region20: #{tpu_custom_call.1} parent=1 // pred_region
      _
    $region21: #{tpu_custom_call.1} parent=1 // pred_fallthru
      _
    // Predicated region
    $region22: #{tpu_custom_call.1} parent=1 // pred_check
      _
    $region23: #{tpu_custom_call.1} parent=1 // pred_check_branch
      %23 = sbr.rel (0) target = $region25
    $region24: #{tpu_custom_call.1} parent=1 // pred_region
      _
    $region25: #{tpu_custom_call.1} parent=1 // pred_fallthru
      _
    %v25 = vld [vmem:[%s3] sm:$0x1]
    %v26 = vld [vmem:[%s0] sm:$0xf]
    %v27 = vld [vmem:[%s0 + $0x4] sm:$0xf]
    %v28 = vld [vmem:[%s0 + $0xc] sm:$0xf]
    %v29 = vld [vmem:[%s0 + $0x10] sm:$0xf]
    %v30 = vld [vmem:[%s0 + $0x18] sm:$0xf]
    %v31 = vld [vmem:[%s0 + $0x1c] sm:$0xf]
    %v32 = vld [vmem:[%s0 + $0x24] sm:$0xf]
    %v33 = vld [vmem:[%s0 + $0x28] sm:$0xf]
    %v34 = vld [vmem:[%s0 + $0x30] sm:$0xf]
    %v35 = vld [vmem:[%s0 + $0x34] sm:$0xf]
    %v36 = vld [vmem:[%s0 + $0x3c] sm:$0xf]
    %v37 = vld [vmem:[%s0 + $0x40] sm:$0xf]
    %v38 = vld [vmem:[%s0 + $0x48] sm:$0xf]
    %v39 = vld [vmem:[%s0 + $0x4c] sm:$0xf]
    %v40 = vld [vmem:[%s0 + $0x54] sm:$0xf]
    %v41 = vld [vmem:[%s0 + $0x58] sm:$0xf]
    %v42 = vld [vmem:[%s1] sm:$0xf]
    %v43 = vld [vmem:[%s1 + $0x4] sm:$0xf]
    %v44 = vld [vmem:[%s1 + $0x8] sm:$0xf]
    %v45 = vld [vmem:[%s1 + $0xc] sm:$0xf]
    %v46 = vld [vmem:[%s0 + $0x8] sm:$0x1]
    %v47 = vld [vmem:[%s0 + $0x14] sm:$0x1]
    %v48 = vld [vmem:[%s0 + $0x20] sm:$0x1]
    %v49 = vld [vmem:[%s0 + $0x2c] sm:$0x1]
    %v50 = vld [vmem:[%s0 + $0x38] sm:$0x1]
    %v51 = vld [vmem:[%s0 + $0x44] sm:$0x1]
    %v52 = vld [vmem:[%s0 + $0x50] sm:$0x1]
    %v53 = vld [vmem:[%s0 + $0x5c] sm:$0x1]
    %vm54 = vsmask.f32 3328
    %vm55 = vsmask.f32 7440
    %vm56 = vmor %vm54, %vm55
    %v58 = vshrl.u32 %v26, 16
    %v60 = vrot.slane %v58, 4
    %v61 = vshll.u32 %v26, 16
    %v63 = vrot.slane %v61, 5
    %v64 = vor.u32 %v60, %v63
    %v65 = vrot.slane %v64, 4
    %v67 = vshll.u32 %v27, 16
    %v69 = vrot.slane %v67, 5
    %v70 = vsel %vm56, %v65, %v69
    %v71 = vshrl.u32 %v27, 16
    %v73 = vrot.slane %v71, 4
    %v74 = vor.u32 %v73, %v69
    %v75 = vrot.slane %v74, 4
    %v77 = vshll.u32 %v46, 16
    %v79 = vrot.slane %v77, 5
    %v80 = vsel %vm56, %v75, %v79
    %v82 = vshrl.u32 %v28, 16
    %v84 = vrot.slane %v82, 4
    %v85 = vshll.u32 %v28, 16
    %v87 = vrot.slane %v85, 5
    %v88 = vor.u32 %v84, %v87
    %v89 = vrot.slane %v88, 4
    %v91 = vshll.u32 %v29, 16
    %v93 = vrot.slane %v91, 5
    %v94 = vsel %vm56, %v89, %v93
    %v95 = vshrl.u32 %v29, 16
    %v97 = vrot.slane %v95, 4
    %v98 = vor.u32 %v97, %v93
    %v99 = vrot.slane %v98, 4
    %v101 = vshll.u32 %v47, 16
    %v103 = vrot.slane %v101, 5
    %v104 = vsel %vm56, %v99, %v103
    %v106 = vshrl.u32 %v30, 16
    %v108 = vrot.slane %v106, 4
    %v109 = vshll.u32 %v30, 16
    %v111 = vrot.slane %v109, 5
    %v112 = vor.u32 %v108, %v111
    %v113 = vrot.slane %v112, 4
    %v115 = vshll.u32 %v31, 16
    %v117 = vrot.slane %v115, 5
    %v118 = vsel %vm56, %v113, %v117
    %v119 = vshrl.u32 %v31, 16
    %v121 = vrot.slane %v119, 4
    %v122 = vor.u32 %v121, %v117
    %v123 = vrot.slane %v122, 4
    %v125 = vshll.u32 %v48, 16
    %v127 = vrot.slane %v125, 5
    %v128 = vsel %vm56, %v123, %v127
    %v130 = vshrl.u32 %v32, 16
    %v132 = vrot.slane %v130, 4
    %v133 = vshll.u32 %v32, 16
    %v135 = vrot.slane %v133, 5
    %v136 = vor.u32 %v132, %v135
    %v137 = vrot.slane %v136, 4
    %v139 = vshll.u32 %v33, 16
    %v141 = vrot.slane %v139, 5
    %v142 = vsel %vm56, %v137, %v141
    %v143 = vshrl.u32 %v33, 16
    %v145 = vrot.slane %v143, 4
    %v146 = vor.u32 %v145, %v141
    %v147 = vrot.slane %v146, 4
    %v149 = vshll.u32 %v49, 16
    %v151 = vrot.slane %v149, 5
    %v152 = vsel %vm56, %v147, %v151
    %v154 = vshrl.u32 %v34, 16
    %v156 = vrot.slane %v154, 4
    %v157 = vshll.u32 %v34, 16
    %v159 = vrot.slane %v157, 5
    %v160 = vor.u32 %v156, %v159
    %v161 = vrot.slane %v160, 4
    %v163 = vshll.u32 %v35, 16
    %v165 = vrot.slane %v163, 5
    %v166 = vsel %vm56, %v161, %v165
    %v167 = vshrl.u32 %v35, 16
    %v169 = vrot.slane %v167, 4
    %v170 = vor.u32 %v169, %v165
    %v171 = vrot.slane %v170, 4
    %v173 = vshll.u32 %v50, 16
    %v175 = vrot.slane %v173, 5
    %v176 = vsel %vm56, %v171, %v175
    %v178 = vshrl.u32 %v36, 16
    %v180 = vrot.slane %v178, 4
    %v181 = vshll.u32 %v36, 16
    %v183 = vrot.slane %v181, 5
    %v184 = vor.u32 %v180, %v183
    %v185 = vrot.slane %v184, 4
    %v187 = vshll.u32 %v37, 16
    %v189 = vrot.slane %v187, 5
    %v190 = vsel %vm56, %v185, %v189
    %v191 = vshrl.u32 %v37, 16
    %v193 = vrot.slane %v191, 4
    %v194 = vor.u32 %v193, %v189
    %v195 = vrot.slane %v194, 4
    %v197 = vshll.u32 %v51, 16
    %v199 = vrot.slane %v197, 5
    %v200 = vsel %vm56, %v195, %v199
    %v202 = vshrl.u32 %v38, 16
    %v204 = vrot.slane %v202, 4
    %v205 = vshll.u32 %v38, 16
    %v207 = vrot.slane %v205, 5
    %v208 = vor.u32 %v204, %v207
    %v209 = vrot.slane %v208, 4
    %v211 = vshll.u32 %v39, 16
    %v213 = vrot.slane %v211, 5
    %v214 = vsel %vm56, %v209, %v213
    %v215 = vshrl.u32 %v39, 16
    %v217 = vrot.slane %v215, 4
    %v218 = vor.u32 %v217, %v213
    %v219 = vrot.slane %v218, 4
    %v221 = vshll.u32 %v52, 16
    %v223 = vrot.slane %v221, 5
    %v224 = vsel %vm56, %v219, %v223
    %v226 = vshrl.u32 %v40, 16
    %v228 = vrot.slane %v226, 4
    %v229 = vshll.u32 %v40, 16
    %v231 = vrot.slane %v229, 5
    %v232 = vor.u32 %v228, %v231
    %v233 = vrot.slane %v232, 4
    %v235 = vshll.u32 %v41, 16
    %v237 = vrot.slane %v235, 5
    %v238 = vsel %vm56, %v233, %v237
    %v239 = vshrl.u32 %v41, 16
    %v241 = vrot.slane %v239, 4
    %v242 = vor.u32 %v241, %v237
    %v243 = vrot.slane %v242, 4
    %v245 = vshll.u32 %v53, 16
    %v247 = vrot.slane %v245, 5
    %v248 = vsel %vm56, %v243, %v247
    %s249 = scalar_lea.vmem %s1, 16
    %v250 = vld [vmem:[%s249] sm:$0xf]
    %v251 = vld [vmem:[%s249 + $0x4] sm:$0xf]
    %v252 = vld [vmem:[%s249 + $0x8] sm:$0xf]
    %v253 = vld [vmem:[%s249 + $0xc] sm:$0xf]
    %v254 = vunpack.c.l.b16 %v70
    %v255 = vunpack.c.l.b16 %v80
    %v256 = vunpack.c.l.b16 %v94
    %v257 = vunpack.c.l.b16 %v104
    %v258 = vunpack.c.l.b16 %v118
    %v259 = vunpack.c.l.b16 %v128
    %v260 = vunpack.c.l.b16 %v142
    %v261 = vunpack.c.l.b16 %v152
    %v262 = vunpack.c.l.b16 %v166
    %v263 = vunpack.c.l.b16 %v176
    %v264 = vunpack.c.l.b16 %v190
    %v265 = vunpack.c.l.b16 %v200
    %v266 = vunpack.c.l.b16 %v214
    %v267 = vunpack.c.l.b16 %v224
    %v268 = vunpack.c.l.b16 %v238
    %v269 = vunpack.c.l.b16 %v248
    %v270 = vpack.c.b16 %v255, %v254
    %v271 = vpack.c.b16 %v257, %v256
    %v272 = vpack.c.b16 %v259, %v258
    %v273 = vpack.c.b16 %v261, %v260
    %v274 = vpack.c.b16 %v263, %v262
    %v275 = vpack.c.b16 %v265, %v264
    %v276 = vpack.c.b16 %v267, %v266
    %v277 = vpack.c.b16 %v269, %v268
    %v282 = vunpack.c.l.b16 %v250
    %v283 = vunpack.c.l.b16 %v251
    %v284 = vunpack.c.l.b16 %v252
    %v285 = vunpack.c.l.b16 %v253
    %v286 = vpack.c.b16 %v283, %v282
    %v287 = vpack.c.b16 %v285, %v284
    %vm290 = vcmask 261120
    %v292 = vsel %vm290, %v270, 0
    %v295 = vsel %vm290, %v271, 0
    %v298 = vsel %vm290, %v272, 0
    %v301 = vsel %vm290, %v273, 0
    %v304 = vsel %vm290, %v274, 0
    %v307 = vsel %vm290, %v275, 0
    %v310 = vsel %vm290, %v276, 0
    %v313 = vsel %vm290, %v277, 0
    %315 = vmatprep.subr.bf16.mxu0 0
    %316 = vmatpush1.bf16.msra.mxu0 %v286
    %317 = vmatprep.subr.bf16.mxu0 0
    %318 = vmatpush1.bf16.msra.mxu0 %v287
    %319 = vmatprep.subr.bf16.mxu0 0
    %320 = vmatpush1.bf16.msra.mxu0 0
    %321 = vmatprep.subr.bf16.mxu0 0
    %322 = vmatpush1.bf16.msra.mxu0 0
    %323 = vmatprep.subr.bf16.mxu0 0
    %324 = vmatpush1.bf16.msra.mxu0 0
    %325 = vmatprep.subr.bf16.mxu0 0
    %326 = vmatpush1.bf16.msra.mxu0 0
    %327 = vmatprep.subr.bf16.mxu0 0
    %328 = vmatpush1.bf16.msra.mxu0 0
    %329 = vmatprep.subr.bf16.mxu0 0
    %330 = vmatpush1.bf16.msra.mxu0 0
    %331 = vmatprep.subr.bf16.mxu0 0
    %332 = vmatpush1.bf16.msra.mxu0 0
    %333 = vmatprep.subr.bf16.mxu0 0
    %334 = vmatpush1.bf16.msra.mxu0 0
    %335 = vmatprep.subr.bf16.mxu0 0
    %336 = vmatpush1.bf16.msra.mxu0 0
    %337 = vmatprep.subr.bf16.mxu0 0
    %338 = vmatpush1.bf16.msra.mxu0 0
    %339 = vmatprep.subr.bf16.mxu0 0
    %340 = vmatpush1.bf16.msra.mxu0 0
    %341 = vmatprep.subr.bf16.mxu0 0
    %342 = vmatpush1.bf16.msra.mxu0 0
    %343 = vmatprep.subr.bf16.mxu0 0
    %344 = vmatpush1.bf16.msra.mxu0 0
    %345 = vmatprep.subr.bf16.mxu0 0
    %346 = vmatpush1.bf16.msra.mxu0 0
    %347 = vmatprep.mubr.bf16.mxu0 0
    %348 = vmatmul.mubr.bf16.gmra.mrb[0].mxu0 %v292
    %v349 = vpop.f32.mrb[0].mxu0
    %v350 = vadd.f32 0.0, %v349
    %v351 = vpop.f32.mrb[0].mxu0
    %v352 = vpop.f32.mrb[0].mxu0
    %v353 = vadd.f32 0.0, %v352
    %v354 = vpop.f32.mrb[0].mxu0
    %355 = vmatprep.mubr.bf16.mxu0 0
    %356 = vmatmul.mubr.bf16.gmra.mrb[0].mxu0 %v295
    %v357 = vpop.f32.mrb[0].mxu0
    %v358 = vadd.f32 0.0, %v357
    %v359 = vpop.f32.mrb[0].mxu0
    %v360 = vpop.f32.mrb[0].mxu0
    %v361 = vadd.f32 0.0, %v360
    %v362 = vpop.f32.mrb[0].mxu0
    %363 = vmatprep.mubr.bf16.mxu0 0
    %364 = vmatmul.mubr.bf16.gmra.mrb[0].mxu0 %v298
    %v365 = vpop.f32.mrb[0].mxu0
    %v366 = vadd.f32 0.0, %v365
    %v367 = vpop.f32.mrb[0].mxu0
    %v368 = vpop.f32.mrb[0].mxu0
    %v369 = vadd.f32 0.0, %v368
    %v370 = vpop.f32.mrb[0].mxu0
    %371 = vmatprep.mubr.bf16.mxu0 0
    %372 = vmatmul.mubr.bf16.gmra.mrb[0].mxu0 %v301
    %v373 = vpop.f32.mrb[0].mxu0
    %v374 = vadd.f32 0.0, %v373
    %v375 = vpop.f32.mrb[0].mxu0
    %v376 = vpop.f32.mrb[0].mxu0
    %v377 = vadd.f32 0.0, %v376
    %v378 = vpop.f32.mrb[0].mxu0
    %379 = vmatprep.mubr.bf16.mxu0 0
    %380 = vmatmul.mubr.bf16.gmra.mrb[0].mxu0 %v304
    %v381 = vpop.f32.mrb[0].mxu0
    %v382 = vadd.f32 0.0, %v381
    %v383 = vpop.f32.mrb[0].mxu0
    %v384 = vpop.f32.mrb[0].mxu0
    %v385 = vadd.f32 0.0, %v384
    %v386 = vpop.f32.mrb[0].mxu0
    %387 = vmatprep.mubr.bf16.mxu0 0
    %388 = vmatmul.mubr.bf16.gmra.mrb[0].mxu0 %v307
    %v389 = vpop.f32.mrb[0].mxu0
    %v390 = vadd.f32 0.0, %v389
    %v391 = vpop.f32.mrb[0].mxu0
    %v392 = vpop.f32.mrb[0].mxu0
    %v393 = vadd.f32 0.0, %v392
    %v394 = vpop.f32.mrb[0].mxu0
    %395 = vmatprep.mubr.bf16.mxu0 0
    %396 = vmatmul.mubr.bf16.gmra.mrb[0].mxu0 %v310
    %v397 = vpop.f32.mrb[0].mxu0
    %v398 = vadd.f32 0.0, %v397
    %v399 = vpop.f32.mrb[0].mxu0
    %v400 = vpop.f32.mrb[0].mxu0
    %v401 = vadd.f32 0.0, %v400
    %v402 = vpop.f32.mrb[0].mxu0
    %403 = vmatprep.mubr.bf16.mxu0 0
    %404 = vmatmul.mubr.bf16.gmra.mrb[0].mxu0 %v313
    %v405 = vpop.f32.mrb[0].mxu0
    %v406 = vadd.f32 0.0, %v405
    %v407 = vpop.f32.mrb[0].mxu0
    %v408 = vpop.f32.mrb[0].mxu0
    %v409 = vadd.f32 0.0, %v408
    %v410 = vpop.f32.mrb[0].mxu0
    %411 = vdwg.mxu0
    %v428 = vunpack.c.l.b16 %v26
    %v429 = vunpack.c.l.b16 %v27
    %v430 = vunpack.c.l.b16 %v28
    %v431 = vunpack.c.l.b16 %v29
    %v432 = vunpack.c.l.b16 %v30
    %v433 = vunpack.c.l.b16 %v31
    %v434 = vunpack.c.l.b16 %v32
    %v435 = vunpack.c.l.b16 %v33
    %v436 = vunpack.c.l.b16 %v34
    %v437 = vunpack.c.l.b16 %v35
    %v438 = vunpack.c.l.b16 %v36
    %v439 = vunpack.c.l.b16 %v37
    %v440 = vunpack.c.l.b16 %v38
    %v441 = vunpack.c.l.b16 %v39
    %v442 = vunpack.c.l.b16 %v40
    %v443 = vunpack.c.l.b16 %v41
    %v444 = vpack.c.b16 %v429, %v428
    %v445 = vpack.c.b16 %v431, %v430
    %v446 = vpack.c.b16 %v433, %v432
    %v447 = vpack.c.b16 %v435, %v434
    %v448 = vpack.c.b16 %v437, %v436
    %v449 = vpack.c.b16 %v439, %v438
    %v450 = vpack.c.b16 %v441, %v440
    %v451 = vpack.c.b16 %v443, %v442
    %v456 = vunpack.c.l.b16 %v42
    %v457 = vunpack.c.l.b16 %v43
    %v458 = vunpack.c.l.b16 %v44
    %v459 = vunpack.c.l.b16 %v45
    %v460 = vpack.c.b16 %v457, %v456
    %v461 = vpack.c.b16 %v459, %v458
    %v465 = vsel %vm290, %v444, 0
    %v468 = vsel %vm290, %v445, 0
    %v471 = vsel %vm290, %v446, 0
    %v474 = vsel %vm290, %v447, 0
    %v477 = vsel %vm290, %v448, 0
    %v480 = vsel %vm290, %v449, 0
    %v483 = vsel %vm290, %v450, 0
    %v486 = vsel %vm290, %v451, 0
    %488 = vmatprep.subr.bf16.mxu0 0
    %489 = vmatpush1.bf16.msra.mxu0 %v460
    %490 = vmatprep.subr.bf16.mxu0 0
    %491 = vmatpush1.bf16.msra.mxu0 %v461
    %492 = vmatprep.subr.bf16.mxu0 0
    %493 = vmatpush1.bf16.msra.mxu0 0
    %494 = vmatprep.subr.bf16.mxu0 0
    %495 = vmatpush1.bf16.msra.mxu0 0
    %496 = vmatprep.subr.bf16.mxu0 0
    %497 = vmatpush1.bf16.msra.mxu0 0
    %498 = vmatprep.subr.bf16.mxu0 0
    %499 = vmatpush1.bf16.msra.mxu0 0
    %500 = vmatprep.subr.bf16.mxu0 0
    %501 = vmatpush1.bf16.msra.mxu0 0
    %502 = vmatprep.subr.bf16.mxu0 0
    %503 = vmatpush1.bf16.msra.mxu0 0
    %504 = vmatprep.subr.bf16.mxu0 0
    %505 = vmatpush1.bf16.msra.mxu0 0
    %506 = vmatprep.subr.bf16.mxu0 0
    %507 = vmatpush1.bf16.msra.mxu0 0
    %508 = vmatprep.subr.bf16.mxu0 0
    %509 = vmatpush1.bf16.msra.mxu0 0
    %510 = vmatprep.subr.bf16.mxu0 0
    %511 = vmatpush1.bf16.msra.mxu0 0
    %512 = vmatprep.subr.bf16.mxu0 0
    %513 = vmatpush1.bf16.msra.mxu0 0
    %514 = vmatprep.subr.bf16.mxu0 0
    %515 = vmatpush1.bf16.msra.mxu0 0
    %516 = vmatprep.subr.bf16.mxu0 0
    %517 = vmatpush1.bf16.msra.mxu0 0
    %518 = vmatprep.subr.bf16.mxu0 0
    %519 = vmatpush1.bf16.msra.mxu0 0
    %520 = vmatprep.mubr.bf16.mxu0 0
    %521 = vmatmul.mubr.bf16.gmra.mrb[0].mxu0 %v465
    %v522 = vpop.f32.mrb[0].mxu0
    %v523 = vadd.f32 %v350, %v522
    %v524 = vpop.f32.mrb[0].mxu0
    %v525 = vpop.f32.mrb[0].mxu0
    %v526 = vadd.f32 %v353, %v525
    %v527 = vpop.f32.mrb[0].mxu0
    %528 = vmatprep.mubr.bf16.mxu0 0
    %529 = vmatmul.mubr.bf16.gmra.mrb[0].mxu0 %v468
    %v530 = vpop.f32.mrb[0].mxu0
    %v531 = vadd.f32 %v358, %v530
    %v532 = vpop.f32.mrb[0].mxu0
    %v533 = vpop.f32.mrb[0].mxu0
    %v534 = vadd.f32 %v361, %v533
    %v535 = vpop.f32.mrb[0].mxu0
    %536 = vmatprep.mubr.bf16.mxu0 0
    %537 = vmatmul.mubr.bf16.gmra.mrb[0].mxu0 %v471
    %v538 = vpop.f32.mrb[0].mxu0
    %v539 = vadd.f32 %v366, %v538
    %v540 = vpop.f32.mrb[0].mxu0
    %v541 = vpop.f32.mrb[0].mxu0
    %v542 = vadd.f32 %v369, %v541
    %v543 = vpop.f32.mrb[0].mxu0
    %544 = vmatprep.mubr.bf16.mxu0 0
    %545 = vmatmul.mubr.bf16.gmra.mrb[0].mxu0 %v474
    %v546 = vpop.f32.mrb[0].mxu0
    %v547 = vadd.f32 %v374, %v546
    %v548 = vpop.f32.mrb[0].mxu0
    %v549 = vpop.f32.mrb[0].mxu0
    %v550 = vadd.f32 %v377, %v549
    %v551 = vpop.f32.mrb[0].mxu0
    %552 = vmatprep.mubr.bf16.mxu0 0
    %553 = vmatmul.mubr.bf16.gmra.mrb[0].mxu0 %v477
    %v554 = vpop.f32.mrb[0].mxu0
    %v555 = vadd.f32 %v382, %v554
    %v556 = vpop.f32.mrb[0].mxu0
    %v557 = vpop.f32.mrb[0].mxu0
    %v558 = vadd.f32 %v385, %v557
    %v559 = vpop.f32.mrb[0].mxu0
    %560 = vmatprep.mubr.bf16.mxu0 0
    %561 = vmatmul.mubr.bf16.gmra.mrb[0].mxu0 %v480
    %v562 = vpop.f32.mrb[0].mxu0
    %v563 = vadd.f32 %v390, %v562
    %v564 = vpop.f32.mrb[0].mxu0
    %v565 = vpop.f32.mrb[0].mxu0
    %v566 = vadd.f32 %v393, %v565
    %v567 = vpop.f32.mrb[0].mxu0
    %568 = vmatprep.mubr.bf16.mxu0 0
    %569 = vmatmul.mubr.bf16.gmra.mrb[0].mxu0 %v483
    %v570 = vpop.f32.mrb[0].mxu0
    %v571 = vadd.f32 %v398, %v570
    %v572 = vpop.f32.mrb[0].mxu0
    %v573 = vpop.f32.mrb[0].mxu0
    %v574 = vadd.f32 %v401, %v573
    %v575 = vpop.f32.mrb[0].mxu0
    %576 = vmatprep.mubr.bf16.mxu0 0
    %577 = vmatmul.mubr.bf16.gmra.mrb[0].mxu0 %v486
    %v578 = vpop.f32.mrb[0].mxu0
    %v579 = vadd.f32 %v406, %v578
    %v580 = vpop.f32.mrb[0].mxu0
    %v581 = vpop.f32.mrb[0].mxu0
    %v582 = vadd.f32 %v409, %v581
    %v583 = vpop.f32.mrb[0].mxu0
    %584 = vdwg.mxu0
    %v585 = vld [vmem:[%s0] sm:$0xe]
    %v586 = vld [vmem:[%s0 + $0xc] sm:$0xe]
    %v587 = vld [vmem:[%s0 + $0x18] sm:$0xe]
    %v588 = vld [vmem:[%s0 + $0x24] sm:$0xe]
    %v589 = vld [vmem:[%s0 + $0x30] sm:$0xe]
    %v590 = vld [vmem:[%s0 + $0x3c] sm:$0xe]
    %v591 = vld [vmem:[%s0 + $0x48] sm:$0xe]
    %v592 = vld [vmem:[%s0 + $0x54] sm:$0xe]
    %vm609 = vcmask 1042432
    %vm610 = vcmask 1046532
    %vm611 = vmor %vm609, %vm610
    %v612 = vrot.slane %v585, 5
    %v613 = vrot.slane %v612, 4
    %v614 = vrot.slane %v27, 5
    %v615 = vsel %vm611, %v613, %v614
    %v616 = vrot.slane %v614, 4
    %v617 = vrot.slane %v46, 5
    %v618 = vsel %vm611, %v616, %v617
    %v619 = vrot.slane %v586, 5
    %v620 = vrot.slane %v619, 4
    %v621 = vrot.slane %v29, 5
    %v622 = vsel %vm611, %v620, %v621
    %v623 = vrot.slane %v621, 4
    %v624 = vrot.slane %v47, 5
    %v625 = vsel %vm611, %v623, %v624
    %v626 = vrot.slane %v587, 5
    %v627 = vrot.slane %v626, 4
    %v628 = vrot.slane %v31, 5
    %v629 = vsel %vm611, %v627, %v628
    %v630 = vrot.slane %v628, 4
    %v631 = vrot.slane %v48, 5
    %v632 = vsel %vm611, %v630, %v631
    %v633 = vrot.slane %v588, 5
    %v634 = vrot.slane %v633, 4
    %v635 = vrot.slane %v33, 5
    %v636 = vsel %vm611, %v634, %v635
    %v637 = vrot.slane %v635, 4
    %v638 = vrot.slane %v49, 5
    %v639 = vsel %vm611, %v637, %v638
    %v640 = vrot.slane %v589, 5
    %v641 = vrot.slane %v640, 4
    %v642 = vrot.slane %v35, 5
    %v643 = vsel %vm611, %v641, %v642
    %v644 = vrot.slane %v642, 4
    %v645 = vrot.slane %v50, 5
    %v646 = vsel %vm611, %v644, %v645
    %v647 = vrot.slane %v590, 5
    %v648 = vrot.slane %v647, 4
    %v649 = vrot.slane %v37, 5
    %v650 = vsel %vm611, %v648, %v649
    %v651 = vrot.slane %v649, 4
    %v652 = vrot.slane %v51, 5
    %v653 = vsel %vm611, %v651, %v652
    %v654 = vrot.slane %v591, 5
    %v655 = vrot.slane %v654, 4
    %v656 = vrot.slane %v39, 5
    %v657 = vsel %vm611, %v655, %v656
    %v658 = vrot.slane %v656, 4
    %v659 = vrot.slane %v52, 5
    %v660 = vsel %vm611, %v658, %v659
    %v661 = vrot.slane %v592, 5
    %v662 = vrot.slane %v661, 4
    %v663 = vrot.slane %v41, 5
    %v664 = vsel %vm611, %v662, %v663
    %v665 = vrot.slane %v663, 4
    %v666 = vrot.slane %v53, 5
    %v667 = vsel %vm611, %v665, %v666
    %s668 = scalar_lea.vmem %s1, 32
    %v669 = vld [vmem:[%s668] sm:$0xf]
    %v670 = vld [vmem:[%s668 + $0x4] sm:$0xf]
    %v671 = vld [vmem:[%s668 + $0x8] sm:$0xf]
    %v672 = vld [vmem:[%s668 + $0xc] sm:$0xf]
    %v673 = vunpack.c.l.b16 %v615
    %v674 = vunpack.c.l.b16 %v618
    %v675 = vunpack.c.l.b16 %v622
    %v676 = vunpack.c.l.b16 %v625
    %v677 = vunpack.c.l.b16 %v629
    %v678 = vunpack.c.l.b16 %v632
    %v679 = vunpack.c.l.b16 %v636
    %v680 = vunpack.c.l.b16 %v639
    %v681 = vunpack.c.l.b16 %v643
    %v682 = vunpack.c.l.b16 %v646
    %v683 = vunpack.c.l.b16 %v650
    %v684 = vunpack.c.l.b16 %v653
    %v685 = vunpack.c.l.b16 %v657
    %v686 = vunpack.c.l.b16 %v660
    %v687 = vunpack.c.l.b16 %v664
    %v688 = vunpack.c.l.b16 %v667
    %v689 = vpack.c.b16 %v674, %v673
    %v690 = vpack.c.b16 %v676, %v675
    %v691 = vpack.c.b16 %v678, %v677
    %v692 = vpack.c.b16 %v680, %v679
    %v693 = vpack.c.b16 %v682, %v681
    %v694 = vpack.c.b16 %v684, %v683
    %v695 = vpack.c.b16 %v686, %v685
    %v696 = vpack.c.b16 %v688, %v687
    %v701 = vunpack.c.l.b16 %v669
    %v702 = vunpack.c.l.b16 %v670
    %v703 = vunpack.c.l.b16 %v671
    %v704 = vunpack.c.l.b16 %v672
    %v705 = vpack.c.b16 %v702, %v701
    %v706 = vpack.c.b16 %v704, %v703
    %v710 = vsel %vm290, %v689, 0
    %v713 = vsel %vm290, %v690, 0
    %v716 = vsel %vm290, %v691, 0
    %v719 = vsel %vm290, %v692, 0
    %v722 = vsel %vm290, %v693, 0
    %v725 = vsel %vm290, %v694, 0
    %v728 = vsel %vm290, %v695, 0
    %v731 = vsel %vm290, %v696, 0
    %733 = vmatprep.subr.bf16.mxu0 0
    %734 = vmatpush1.bf16.msra.mxu0 %v705
    %735 = vmatprep.subr.bf16.mxu0 0
    %736 = vmatpush1.bf16.msra.mxu0 %v706
    %737 = vmatprep.subr.bf16.mxu0 0
    %738 = vmatpush1.bf16.msra.mxu0 0
    %739 = vmatprep.subr.bf16.mxu0 0
    %740 = vmatpush1.bf16.msra.mxu0 0
    %741 = vmatprep.subr.bf16.mxu0 0
    %742 = vmatpush1.bf16.msra.mxu0 0
    %743 = vmatprep.subr.bf16.mxu0 0
    %744 = vmatpush1.bf16.msra.mxu0 0
    %745 = vmatprep.subr.bf16.mxu0 0
    %746 = vmatpush1.bf16.msra.mxu0 0
    %747 = vmatprep.subr.bf16.mxu0 0
    %748 = vmatpush1.bf16.msra.mxu0 0
    %749 = vmatprep.subr.bf16.mxu0 0
    %750 = vmatpush1.bf16.msra.mxu0 0
    %751 = vmatprep.subr.bf16.mxu0 0
    %752 = vmatpush1.bf16.msra.mxu0 0
    %753 = vmatprep.subr.bf16.mxu0 0
    %754 = vmatpush1.bf16.msra.mxu0 0
    %755 = vmatprep.subr.bf16.mxu0 0
    %756 = vmatpush1.bf16.msra.mxu0 0
    %757 = vmatprep.subr.bf16.mxu0 0
    %758 = vmatpush1.bf16.msra.mxu0 0
    %759 = vmatprep.subr.bf16.mxu0 0
    %760 = vmatpush1.bf16.msra.mxu0 0
    %761 = vmatprep.subr.bf16.mxu0 0
    %762 = vmatpush1.bf16.msra.mxu0 0
    %763 = vmatprep.subr.bf16.mxu0 0
    %764 = vmatpush1.bf16.msra.mxu0 0
    %765 = vmatprep.mubr.bf16.mxu0 0
    %766 = vmatmul.mubr.bf16.gmra.mrb[0].mxu0 %v710
    %v767 = vpop.f32.mrb[0].mxu0
    %v768 = vadd.f32 0.0, %v767
    %v769 = vpop.f32.mrb[0].mxu0
    %v770 = vpop.f32.mrb[0].mxu0
    %v771 = vadd.f32 0.0, %v770
    %v772 = vpop.f32.mrb[0].mxu0
    %773 = vmatprep.mubr.bf16.mxu0 0
    %774 = vmatmul.mubr.bf16.gmra.mrb[0].mxu0 %v713
    %v775 = vpop.f32.mrb[0].mxu0
    %v776 = vadd.f32 0.0, %v775
    %v777 = vpop.f32.mrb[0].mxu0
    %v778 = vpop.f32.mrb[0].mxu0
    %v779 = vadd.f32 0.0, %v778
    %v780 = vpop.f32.mrb[0].mxu0
    %781 = vmatprep.mubr.bf16.mxu0 0
    %782 = vmatmul.mubr.bf16.gmra.mrb[0].mxu0 %v716
    %v783 = vpop.f32.mrb[0].mxu0
    %v784 = vadd.f32 0.0, %v783
    %v785 = vpop.f32.mrb[0].mxu0
    %v786 = vpop.f32.mrb[0].mxu0
    %v787 = vadd.f32 0.0, %v786
    %v788 = vpop.f32.mrb[0].mxu0
    %789 = vmatprep.mubr.bf16.mxu0 0
    %790 = vmatmul.mubr.bf16.gmra.mrb[0].mxu0 %v719
    %v791 = vpop.f32.mrb[0].mxu0
    %v792 = vadd.f32 0.0, %v791
    %v793 = vpop.f32.mrb[0].mxu0
    %v794 = vpop.f32.mrb[0].mxu0
    %v795 = vadd.f32 0.0, %v794
    %v796 = vpop.f32.mrb[0].mxu0
    %797 = vmatprep.mubr.bf16.mxu0 0
    %798 = vmatmul.mubr.bf16.gmra.mrb[0].mxu0 %v722
    %v799 = vpop.f32.mrb[0].mxu0
    %v800 = vadd.f32 0.0, %v799
    %v801 = vpop.f32.mrb[0].mxu0
    %v802 = vpop.f32.mrb[0].mxu0
    %v803 = vadd.f32 0.0, %v802
    %v804 = vpop.f32.mrb[0].mxu0
    %805 = vmatprep.mubr.bf16.mxu0 0
    %806 = vmatmul.mubr.bf16.gmra.mrb[0].mxu0 %v725
    %v807 = vpop.f32.mrb[0].mxu0
    %v808 = vadd.f32 0.0, %v807
    %v809 = vpop.f32.mrb[0].mxu0
    %v810 = vpop.f32.mrb[0].mxu0
    %v811 = vadd.f32 0.0, %v810
    %v812 = vpop.f32.mrb[0].mxu0
    %813 = vmatprep.mubr.bf16.mxu0 0
    %814 = vmatmul.mubr.bf16.gmra.mrb[0].mxu0 %v728
    %v815 = vpop.f32.mrb[0].mxu0
    %v816 = vadd.f32 0.0, %v815
    %v817 = vpop.f32.mrb[0].mxu0
    %v818 = vpop.f32.mrb[0].mxu0
    %v819 = vadd.f32 0.0, %v818
    %v820 = vpop.f32.mrb[0].mxu0
    %821 = vmatprep.mubr.bf16.mxu0 0
    %822 = vmatmul.mubr.bf16.gmra.mrb[0].mxu0 %v731
    %v823 = vpop.f32.mrb[0].mxu0
    %v824 = vadd.f32 0.0, %v823
    %v825 = vpop.f32.mrb[0].mxu0
    %v826 = vpop.f32.mrb[0].mxu0
    %v827 = vadd.f32 0.0, %v826
    %v828 = vpop.f32.mrb[0].mxu0
    %829 = vdwg.mxu0
    %v830 = vadd.f32 %v523, %v768
    %v831 = vadd.f32 %v526, %v771
    %v832 = vadd.f32 %v531, %v776
    %v833 = vadd.f32 %v534, %v779
    %v834 = vadd.f32 %v539, %v784
    %v835 = vadd.f32 %v542, %v787
    %v836 = vadd.f32 %v547, %v792
    %v837 = vadd.f32 %v550, %v795
    %v838 = vadd.f32 %v555, %v800
    %v839 = vadd.f32 %v558, %v803
    %v840 = vadd.f32 %v563, %v808
    %v841 = vadd.f32 %v566, %v811
    %v842 = vadd.f32 %v571, %v816
    %v843 = vadd.f32 %v574, %v819
    %v844 = vadd.f32 %v579, %v824
    %v845 = vadd.f32 %v582, %v827
    %v846 = vld [vmem:[%s0 + $0x8] sm:$0x3]
    %v847 = vld [vmem:[%s0 + $0x14] sm:$0x3]
    %v848 = vld [vmem:[%s0 + $0x20] sm:$0x3]
    %v849 = vld [vmem:[%s0 + $0x2c] sm:$0x3]
    %v850 = vld [vmem:[%s0 + $0x38] sm:$0x3]
    %v851 = vld [vmem:[%s0 + $0x44] sm:$0x3]
    %v852 = vld [vmem:[%s0 + $0x50] sm:$0x3]
    %v853 = vld [vmem:[%s0 + $0x5c] sm:$0x3]
    %vm854 = vsmask.f32 2304
    %vm855 = vsmask.f32 6416
    %vm856 = vmor %vm854, %vm855
    %v858 = vshrl.u32 %v585, 16
    %v860 = vrot.slane %v858, 5
    %v861 = vshll.u32 %v585, 16
    %v863 = vrot.slane %v861, 6
    %v864 = vor.u32 %v860, %v863
    %v865 = vrot.slane %v864, 4
    %v866 = vrot.slane %v71, 5
    %v867 = vrot.slane %v67, 6
    %v868 = vor.u32 %v866, %v867
    %v869 = vsel %vm856, %v865, %v868
    %v870 = vrot.slane %v868, 4
    %v872 = vshrl.u32 %v846, 16
    %v874 = vrot.slane %v872, 5
    %v875 = vshll.u32 %v846, 16
    %v877 = vrot.slane %v875, 6
    %v878 = vor.u32 %v874, %v877
    %v879 = vsel %vm856, %v870, %v878
    %v881 = vshrl.u32 %v586, 16
    %v883 = vrot.slane %v881, 5
    %v884 = vshll.u32 %v586, 16
    %v886 = vrot.slane %v884, 6
    %v887 = vor.u32 %v883, %v886
    %v888 = vrot.slane %v887, 4
    %v889 = vrot.slane %v95, 5
    %v890 = vrot.slane %v91, 6
    %v891 = vor.u32 %v889, %v890
    %v892 = vsel %vm856, %v888, %v891
    %v893 = vrot.slane %v891, 4
    %v895 = vshrl.u32 %v847, 16
    %v897 = vrot.slane %v895, 5
    %v898 = vshll.u32 %v847, 16
    %v900 = vrot.slane %v898, 6
    %v901 = vor.u32 %v897, %v900
    %v902 = vsel %vm856, %v893, %v901
    %v904 = vshrl.u32 %v587, 16
    %v906 = vrot.slane %v904, 5
    %v907 = vshll.u32 %v587, 16
    %v909 = vrot.slane %v907, 6
    %v910 = vor.u32 %v906, %v909
    %v911 = vrot.slane %v910, 4
    %v912 = vrot.slane %v119, 5
    %v913 = vrot.slane %v115, 6
    %v914 = vor.u32 %v912, %v913
    %v915 = vsel %vm856, %v911, %v914
    %v916 = vrot.slane %v914, 4
    %v918 = vshrl.u32 %v848, 16
    %v920 = vrot.slane %v918, 5
    %v921 = vshll.u32 %v848, 16
    %v923 = vrot.slane %v921, 6
    %v924 = vor.u32 %v920, %v923
    %v925 = vsel %vm856, %v916, %v924
    %v927 = vshrl.u32 %v588, 16
    %v929 = vrot.slane %v927, 5
    %v930 = vshll.u32 %v588, 16
    %v932 = vrot.slane %v930, 6
    %v933 = vor.u32 %v929, %v932
    %v934 = vrot.slane %v933, 4
    %v935 = vrot.slane %v143, 5
    %v936 = vrot.slane %v139, 6
    %v937 = vor.u32 %v935, %v936
    %v938 = vsel %vm856, %v934, %v937
    %v939 = vrot.slane %v937, 4
    %v941 = vshrl.u32 %v849, 16
    %v943 = vrot.slane %v941, 5
    %v944 = vshll.u32 %v849, 16
    %v946 = vrot.slane %v944, 6
    %v947 = vor.u32 %v943, %v946
    %v948 = vsel %vm856, %v939, %v947
    %v950 = vshrl.u32 %v589, 16
    %v952 = vrot.slane %v950, 5
    %v953 = vshll.u32 %v589, 16
    %v955 = vrot.slane %v953, 6
    %v956 = vor.u32 %v952, %v955
    %v957 = vrot.slane %v956, 4
    %v958 = vrot.slane %v167, 5
    %v959 = vrot.slane %v163, 6
    %v960 = vor.u32 %v958, %v959
    %v961 = vsel %vm856, %v957, %v960
    %v962 = vrot.slane %v960, 4
    %v964 = vshrl.u32 %v850, 16
    %v966 = vrot.slane %v964, 5
    %v967 = vshll.u32 %v850, 16
    %v969 = vrot.slane %v967, 6
    %v970 = vor.u32 %v966, %v969
    %v971 = vsel %vm856, %v962, %v970
    %v973 = vshrl.u32 %v590, 16
    %v975 = vrot.slane %v973, 5
    %v976 = vshll.u32 %v590, 16
    %v978 = vrot.slane %v976, 6
    %v979 = vor.u32 %v975, %v978
    %v980 = vrot.slane %v979, 4
    %v981 = vrot.slane %v191, 5
    %v982 = vrot.slane %v187, 6
    %v983 = vor.u32 %v981, %v982
    %v984 = vsel %vm856, %v980, %v983
    %v985 = vrot.slane %v983, 4
    %v987 = vshrl.u32 %v851, 16
    %v989 = vrot.slane %v987, 5
    %v990 = vshll.u32 %v851, 16
    %v992 = vrot.slane %v990, 6
    %v993 = vor.u32 %v989, %v992
    %v994 = vsel %vm856, %v985, %v993
    %v996 = vshrl.u32 %v591, 16
    %v998 = vrot.slane %v996, 5
    %v999 = vshll.u32 %v591, 16
    %v1001 = vrot.slane %v999, 6
    %v1002 = vor.u32 %v998, %v1001
    %v1003 = vrot.slane %v1002, 4
    %v1004 = vrot.slane %v215, 5
    %v1005 = vrot.slane %v211, 6
    %v1006 = vor.u32 %v1004, %v1005
    %v1007 = vsel %vm856, %v1003, %v1006
    %v1008 = vrot.slane %v1006, 4
    %v1010 = vshrl.u32 %v852, 16
    %v1012 = vrot.slane %v1010, 5
    %v1013 = vshll.u32 %v852, 16
    %v1015 = vrot.slane %v1013, 6
    %v1016 = vor.u32 %v1012, %v1015
    %v1017 = vsel %vm856, %v1008, %v1016
    %v1019 = vshrl.u32 %v592, 16
    %v1021 = vrot.slane %v1019, 5
    %v1022 = vshll.u32 %v592, 16
    %v1024 = vrot.slane %v1022, 6
    %v1025 = vor.u32 %v1021, %v1024
    %v1026 = vrot.slane %v1025, 4
    %v1027 = vrot.slane %v239, 5
    %v1028 = vrot.slane %v235, 6
    %v1029 = vor.u32 %v1027, %v1028
    %v1030 = vsel %vm856, %v1026, %v1029
    %v1031 = vrot.slane %v1029, 4
    %v1033 = vshrl.u32 %v853, 16
    %v1035 = vrot.slane %v1033, 5
    %v1036 = vshll.u32 %v853, 16
    %v1038 = vrot.slane %v1036, 6
    %v1039 = vor.u32 %v1035, %v1038
    %v1040 = vsel %vm856, %v1031, %v1039
    %s1041 = scalar_lea.vmem %s1, 48
    %v1042 = vld [vmem:[%s1041] sm:$0xf]
    %v1043 = vld [vmem:[%s1041 + $0x4] sm:$0xf]
    %v1044 = vld [vmem:[%s1041 + $0x8] sm:$0xf]
    %v1045 = vld [vmem:[%s1041 + $0xc] sm:$0xf]
    %v1046 = vunpack.c.l.b16 %v869
    %v1047 = vunpack.c.l.b16 %v879
    %v1048 = vunpack.c.l.b16 %v892
    %v1049 = vunpack.c.l.b16 %v902
    %v1050 = vunpack.c.l.b16 %v915
    %v1051 = vunpack.c.l.b16 %v925
    %v1052 = vunpack.c.l.b16 %v938
    %v1053 = vunpack.c.l.b16 %v948
    %v1054 = vunpack.c.l.b16 %v961
    %v1055 = vunpack.c.l.b16 %v971
    %v1056 = vunpack.c.l.b16 %v984
    %v1057 = vunpack.c.l.b16 %v994
    %v1058 = vunpack.c.l.b16 %v1007
    %v1059 = vunpack.c.l.b16 %v1017
    %v1060 = vunpack.c.l.b16 %v1030
    %v1061 = vunpack.c.l.b16 %v1040
    %v1062 = vpack.c.b16 %v1047, %v1046
    %v1063 = vpack.c.b16 %v1049, %v1048
    %v1064 = vpack.c.b16 %v1051, %v1050
    %v1065 = vpack.c.b16 %v1053, %v1052
    %v1066 = vpack.c.b16 %v1055, %v1054
    %v1067 = vpack.c.b16 %v1057, %v1056
    %v1068 = vpack.c.b16 %v1059, %v1058
    %v1069 = vpack.c.b16 %v1061, %v1060
    %v1074 = vunpack.c.l.b16 %v1042
    %v1075 = vunpack.c.l.b16 %v1043
    %v1076 = vunpack.c.l.b16 %v1044
    %v1077 = vunpack.c.l.b16 %v1045
    %v1078 = vpack.c.b16 %v1075, %v1074
    %v1079 = vpack.c.b16 %v1077, %v1076
    %v1083 = vsel %vm290, %v1062, 0
    %v1086 = vsel %vm290, %v1063, 0
    %v1089 = vsel %vm290, %v1064, 0
    %v1092 = vsel %vm290, %v1065, 0
    %v1095 = vsel %vm290, %v1066, 0
    %v1098 = vsel %vm290, %v1067, 0
    %v1101 = vsel %vm290, %v1068, 0
    %v1104 = vsel %vm290, %v1069, 0
    %1106 = vmatprep.subr.bf16.mxu0 0
    %1107 = vmatpush1.bf16.msra.mxu0 %v1078
    %1108 = vmatprep.subr.bf16.mxu0 0
    %1109 = vmatpush1.bf16.msra.mxu0 %v1079
    %1110 = vmatprep.subr.bf16.mxu0 0
    %1111 = vmatpush1.bf16.msra.mxu0 0
    %1112 = vmatprep.subr.bf16.mxu0 0
    %1113 = vmatpush1.bf16.msra.mxu0 0
    %1114 = vmatprep.subr.bf16.mxu0 0
    %1115 = vmatpush1.bf16.msra.mxu0 0
    %1116 = vmatprep.subr.bf16.mxu0 0
    %1117 = vmatpush1.bf16.msra.mxu0 0
    %1118 = vmatprep.subr.bf16.mxu0 0
    %1119 = vmatpush1.bf16.msra.mxu0 0
    %1120 = vmatprep.subr.bf16.mxu0 0
    %1121 = vmatpush1.bf16.msra.mxu0 0
    %1122 = vmatprep.subr.bf16.mxu0 0
    %1123 = vmatpush1.bf16.msra.mxu0 0
    %1124 = vmatprep.subr.bf16.mxu0 0
    %1125 = vmatpush1.bf16.msra.mxu0 0
    %1126 = vmatprep.subr.bf16.mxu0 0
    %1127 = vmatpush1.bf16.msra.mxu0 0
    %1128 = vmatprep.subr.bf16.mxu0 0
    %1129 = vmatpush1.bf16.msra.mxu0 0
    %1130 = vmatprep.subr.bf16.mxu0 0
    %1131 = vmatpush1.bf16.msra.mxu0 0
    %1132 = vmatprep.subr.bf16.mxu0 0
    %1133 = vmatpush1.bf16.msra.mxu0 0
    %1134 = vmatprep.subr.bf16.mxu0 0
    %1135 = vmatpush1.bf16.msra.mxu0 0
    %1136 = vmatprep.subr.bf16.mxu0 0
    %1137 = vmatpush1.bf16.msra.mxu0 0
    %1138 = vmatprep.mubr.bf16.mxu0 0
    %1139 = vmatmul.mubr.bf16.gmra.mrb[0].mxu0 %v1083
    %v1140 = vpop.f32.mrb[0].mxu0
    %v1141 = vadd.f32 0.0, %v1140
    %v1142 = vpop.f32.mrb[0].mxu0
    %v1143 = vpop.f32.mrb[0].mxu0
    %v1144 = vadd.f32 0.0, %v1143
    %v1145 = vpop.f32.mrb[0].mxu0
    %1146 = vmatprep.mubr.bf16.mxu0 0
    %1147 = vmatmul.mubr.bf16.gmra.mrb[0].mxu0 %v1086
    %v1148 = vpop.f32.mrb[0].mxu0
    %v1149 = vadd.f32 0.0, %v1148
    %v1150 = vpop.f32.mrb[0].mxu0
    %v1151 = vpop.f32.mrb[0].mxu0
    %v1152 = vadd.f32 0.0, %v1151
    %v1153 = vpop.f32.mrb[0].mxu0
    %1154 = vmatprep.mubr.bf16.mxu0 0
    %1155 = vmatmul.mubr.bf16.gmra.mrb[0].mxu0 %v1089
    %v1156 = vpop.f32.mrb[0].mxu0
    %v1157 = vadd.f32 0.0, %v1156
    %v1158 = vpop.f32.mrb[0].mxu0
    %v1159 = vpop.f32.mrb[0].mxu0
    %v1160 = vadd.f32 0.0, %v1159
    %v1161 = vpop.f32.mrb[0].mxu0
    %1162 = vmatprep.mubr.bf16.mxu0 0
    %1163 = vmatmul.mubr.bf16.gmra.mrb[0].mxu0 %v1092
    %v1164 = vpop.f32.mrb[0].mxu0
    %v1165 = vadd.f32 0.0, %v1164
    %v1166 = vpop.f32.mrb[0].mxu0
    %v1167 = vpop.f32.mrb[0].mxu0
    %v1168 = vadd.f32 0.0, %v1167
    %v1169 = vpop.f32.mrb[0].mxu0
    %1170 = vmatprep.mubr.bf16.mxu0 0
    %1171 = vmatmul.mubr.bf16.gmra.mrb[0].mxu0 %v1095
    %v1172 = vpop.f32.mrb[0].mxu0
    %v1173 = vadd.f32 0.0, %v1172
    %v1174 = vpop.f32.mrb[0].mxu0
    %v1175 = vpop.f32.mrb[0].mxu0
    %v1176 = vadd.f32 0.0, %v1175
    %v1177 = vpop.f32.mrb[0].mxu0
    %1178 = vmatprep.mubr.bf16.mxu0 0
    %1179 = vmatmul.mubr.bf16.gmra.mrb[0].mxu0 %v1098
    %v1180 = vpop.f32.mrb[0].mxu0
    %v1181 = vadd.f32 0.0, %v1180
    %v1182 = vpop.f32.mrb[0].mxu0
    %v1183 = vpop.f32.mrb[0].mxu0
    %v1184 = vadd.f32 0.0, %v1183
    %v1185 = vpop.f32.mrb[0].mxu0
    %1186 = vmatprep.mubr.bf16.mxu0 0
    %1187 = vmatmul.mubr.bf16.gmra.mrb[0].mxu0 %v1101
    %v1188 = vpop.f32.mrb[0].mxu0
    %v1189 = vadd.f32 0.0, %v1188
    %v1190 = vpop.f32.mrb[0].mxu0
    %v1191 = vpop.f32.mrb[0].mxu0
    %v1192 = vadd.f32 0.0, %v1191
    %v1193 = vpop.f32.mrb[0].mxu0
    %1194 = vmatprep.mubr.bf16.mxu0 0
    %1195 = vmatmul.mubr.bf16.gmra.mrb[0].mxu0 %v1104
    %v1196 = vpop.f32.mrb[0].mxu0
    %v1197 = vadd.f32 0.0, %v1196
    %v1198 = vpop.f32.mrb[0].mxu0
    %v1199 = vpop.f32.mrb[0].mxu0
    %v1200 = vadd.f32 0.0, %v1199
    %v1201 = vpop.f32.mrb[0].mxu0
    %1202 = vdwg.mxu0
    %v1203 = vadd.f32 %v830, %v1141
    %v1204 = vadd.f32 %v831, %v1144
    %v1205 = vadd.f32 %v832, %v1149
    %v1206 = vadd.f32 %v833, %v1152
    %v1207 = vadd.f32 %v834, %v1157
    %v1208 = vadd.f32 %v835, %v1160
    %v1209 = vadd.f32 %v836, %v1165
    %v1210 = vadd.f32 %v837, %v1168
    %v1211 = vadd.f32 %v838, %v1173
    %v1212 = vadd.f32 %v839, %v1176
    %v1213 = vadd.f32 %v840, %v1181
    %v1214 = vadd.f32 %v841, %v1184
    %v1215 = vadd.f32 %v842, %v1189
    %v1216 = vadd.f32 %v843, %v1192
    %v1217 = vadd.f32 %v844, %v1197
    %v1218 = vadd.f32 %v845, %v1200
    %v1219 = vld [vmem:[%s0] sm:$0xc]
    %v1220 = vld [vmem:[%s0 + $0xc] sm:$0xc]
    %v1221 = vld [vmem:[%s0 + $0x18] sm:$0xc]
    %v1222 = vld [vmem:[%s0 + $0x24] sm:$0xc]
    %v1223 = vld [vmem:[%s0 + $0x30] sm:$0xc]
    %v1224 = vld [vmem:[%s0 + $0x3c] sm:$0xc]
    %v1225 = vld [vmem:[%s0 + $0x48] sm:$0xc]
    %v1226 = vld [vmem:[%s0 + $0x54] sm:$0xc]
    %vm1243 = vcmask 1041408
    %vm1244 = vcmask 1045508
    %vm1245 = vmor %vm1243, %vm1244
    %v1246 = vrot.slane %v1219, 6
    %v1247 = vrot.slane %v1246, 4
    %v1248 = vrot.slane %v27, 6
    %v1249 = vsel %vm1245, %v1247, %v1248
    %v1250 = vrot.slane %v1248, 4
    %v1251 = vrot.slane %v846, 6
    %v1252 = vsel %vm1245, %v1250, %v1251
    %v1253 = vrot.slane %v1220, 6
    %v1254 = vrot.slane %v1253, 4
    %v1255 = vrot.slane %v29, 6
    %v1256 = vsel %vm1245, %v1254, %v1255
    %v1257 = vrot.slane %v1255, 4
    %v1258 = vrot.slane %v847, 6
    %v1259 = vsel %vm1245, %v1257, %v1258
    %v1260 = vrot.slane %v1221, 6
    %v1261 = vrot.slane %v1260, 4
    %v1262 = vrot.slane %v31, 6
    %v1263 = vsel %vm1245, %v1261, %v1262
    %v1264 = vrot.slane %v1262, 4
    %v1265 = vrot.slane %v848, 6
    %v1266 = vsel %vm1245, %v1264, %v1265
    %v1267 = vrot.slane %v1222, 6
    %v1268 = vrot.slane %v1267, 4
    %v1269 = vrot.slane %v33, 6
    %v1270 = vsel %vm1245, %v1268, %v1269
    %v1271 = vrot.slane %v1269, 4
    %v1272 = vrot.slane %v849, 6
    %v1273 = vsel %vm1245, %v1271, %v1272
    %v1274 = vrot.slane %v1223, 6
    %v1275 = vrot.slane %v1274, 4
    %v1276 = vrot.slane %v35, 6
    %v1277 = vsel %vm1245, %v1275, %v1276
    %v1278 = vrot.slane %v1276, 4
    %v1279 = vrot.slane %v850, 6
    %v1280 = vsel %vm1245, %v1278, %v1279
    %v1281 = vrot.slane %v1224, 6
    %v1282 = vrot.slane %v1281, 4
    %v1283 = vrot.slane %v37, 6
    %v1284 = vsel %vm1245, %v1282, %v1283
    %v1285 = vrot.slane %v1283, 4
    %v1286 = vrot.slane %v851, 6
    %v1287 = vsel %vm1245, %v1285, %v1286
    %v1288 = vrot.slane %v1225, 6
    %v1289 = vrot.slane %v1288, 4
    %v1290 = vrot.slane %v39, 6
    %v1291 = vsel %vm1245, %v1289, %v1290
    %v1292 = vrot.slane %v1290, 4
    %v1293 = vrot.slane %v852, 6
    %v1294 = vsel %vm1245, %v1292, %v1293
    %v1295 = vrot.slane %v1226, 6
    %v1296 = vrot.slane %v1295, 4
    %v1297 = vrot.slane %v41, 6
    %v1298 = vsel %vm1245, %v1296, %v1297
    %v1299 = vrot.slane %v1297, 4
    %v1300 = vrot.slane %v853, 6
    %v1301 = vsel %vm1245, %v1299, %v1300
    %s1302 = scalar_lea.vmem %s1, 64
    %v1303 = vld [vmem:[%s1302] sm:$0xf]
    %v1304 = vld [vmem:[%s1302 + $0x4] sm:$0xf]
    %v1305 = vld [vmem:[%s1302 + $0x8] sm:$0xf]
    %v1306 = vld [vmem:[%s1302 + $0xc] sm:$0xf]
    %v1307 = vunpack.c.l.b16 %v1249
    %v1308 = vunpack.c.l.b16 %v1252
    %v1309 = vunpack.c.l.b16 %v1256
    %v1310 = vunpack.c.l.b16 %v1259
    %v1311 = vunpack.c.l.b16 %v1263
    %v1312 = vunpack.c.l.b16 %v1266
    %v1313 = vunpack.c.l.b16 %v1270
    %v1314 = vunpack.c.l.b16 %v1273
    %v1315 = vunpack.c.l.b16 %v1277
    %v1316 = vunpack.c.l.b16 %v1280
    %v1317 = vunpack.c.l.b16 %v1284
    %v1318 = vunpack.c.l.b16 %v1287
    %v1319 = vunpack.c.l.b16 %v1291
    %v1320 = vunpack.c.l.b16 %v1294
    %v1321 = vunpack.c.l.b16 %v1298
    %v1322 = vunpack.c.l.b16 %v1301
    %v1323 = vpack.c.b16 %v1308, %v1307
    %v1324 = vpack.c.b16 %v1310, %v1309
    %v1325 = vpack.c.b16 %v1312, %v1311
    %v1326 = vpack.c.b16 %v1314, %v1313
    %v1327 = vpack.c.b16 %v1316, %v1315
    %v1328 = vpack.c.b16 %v1318, %v1317
    %v1329 = vpack.c.b16 %v1320, %v1319
    %v1330 = vpack.c.b16 %v1322, %v1321
    %v1335 = vunpack.c.l.b16 %v1303
    %v1336 = vunpack.c.l.b16 %v1304
    %v1337 = vunpack.c.l.b16 %v1305
    %v1338 = vunpack.c.l.b16 %v1306
    %v1339 = vpack.c.b16 %v1336, %v1335
    %v1340 = vpack.c.b16 %v1338, %v1337
    %v1344 = vsel %vm290, %v1323, 0
    %v1347 = vsel %vm290, %v1324, 0
    %v1350 = vsel %vm290, %v1325, 0
    %v1353 = vsel %vm290, %v1326, 0
    %v1356 = vsel %vm290, %v1327, 0
    %v1359 = vsel %vm290, %v1328, 0
    %v1362 = vsel %vm290, %v1329, 0
    %v1365 = vsel %vm290, %v1330, 0
    %1367 = vmatprep.subr.bf16.mxu0 0
    %1368 = vmatpush1.bf16.msra.mxu0 %v1339
    %1369 = vmatprep.subr.bf16.mxu0 0
    %1370 = vmatpush1.bf16.msra.mxu0 %v1340
    %1371 = vmatprep.subr.bf16.mxu0 0
    %1372 = vmatpush1.bf16.msra.mxu0 0
    %1373 = vmatprep.subr.bf16.mxu0 0
    %1374 = vmatpush1.bf16.msra.mxu0 0
    %1375 = vmatprep.subr.bf16.mxu0 0
    %1376 = vmatpush1.bf16.msra.mxu0 0
    %1377 = vmatprep.subr.bf16.mxu0 0
    %1378 = vmatpush1.bf16.msra.mxu0 0
    %1379 = vmatprep.subr.bf16.mxu0 0
    %1380 = vmatpush1.bf16.msra.mxu0 0
    %1381 = vmatprep.subr.bf16.mxu0 0
    %1382 = vmatpush1.bf16.msra.mxu0 0
    %1383 = vmatprep.subr.bf16.mxu0 0
    %1384 = vmatpush1.bf16.msra.mxu0 0
    %1385 = vmatprep.subr.bf16.mxu0 0
    %1386 = vmatpush1.bf16.msra.mxu0 0
    %1387 = vmatprep.subr.bf16.mxu0 0
    %1388 = vmatpush1.bf16.msra.mxu0 0
    %1389 = vmatprep.subr.bf16.mxu0 0
    %1390 = vmatpush1.bf16.msra.mxu0 0
    %1391 = vmatprep.subr.bf16.mxu0 0
    %1392 = vmatpush1.bf16.msra.mxu0 0
    %1393 = vmatprep.subr.bf16.mxu0 0
    %1394 = vmatpush1.bf16.msra.mxu0 0
    %1395 = vmatprep.subr.bf16.mxu0 0
    %1396 = vmatpush1.bf16.msra.mxu0 0
    %1397 = vmatprep.subr.bf16.mxu0 0
    %1398 = vmatpush1.bf16.msra.mxu0 0
    %1399 = vmatprep.mubr.bf16.mxu0 0
    %1400 = vmatmul.mubr.bf16.gmra.mrb[0].mxu0 %v1344
    %v1401 = vpop.f32.mrb[0].mxu0
    %v1402 = vadd.f32 0.0, %v1401
    %v1403 = vpop.f32.mrb[0].mxu0
    %v1404 = vpop.f32.mrb[0].mxu0
    %v1405 = vadd.f32 0.0, %v1404
    %v1406 = vpop.f32.mrb[0].mxu0
    %1407 = vmatprep.mubr.bf16.mxu0 0
    %1408 = vmatmul.mubr.bf16.gmra.mrb[0].mxu0 %v1347
    %v1409 = vpop.f32.mrb[0].mxu0
    %v1410 = vadd.f32 0.0, %v1409
    %v1411 = vpop.f32.mrb[0].mxu0
    %v1412 = vpop.f32.mrb[0].mxu0
    %v1413 = vadd.f32 0.0, %v1412
    %v1414 = vpop.f32.mrb[0].mxu0
    %1415 = vmatprep.mubr.bf16.mxu0 0
    %1416 = vmatmul.mubr.bf16.gmra.mrb[0].mxu0 %v1350
    %v1417 = vpop.f32.mrb[0].mxu0
    %v1418 = vadd.f32 0.0, %v1417
    %v1419 = vpop.f32.mrb[0].mxu0
    %v1420 = vpop.f32.mrb[0].mxu0
    %v1421 = vadd.f32 0.0, %v1420
    %v1422 = vpop.f32.mrb[0].mxu0
    %1423 = vmatprep.mubr.bf16.mxu0 0
    %1424 = vmatmul.mubr.bf16.gmra.mrb[0].mxu0 %v1353
    %v1425 = vpop.f32.mrb[0].mxu0
    %v1426 = vadd.f32 0.0, %v1425
    %v1427 = vpop.f32.mrb[0].mxu0
    %v1428 = vpop.f32.mrb[0].mxu0
    %v1429 = vadd.f32 0.0, %v1428
    %v1430 = vpop.f32.mrb[0].mxu0
    %1431 = vmatprep.mubr.bf16.mxu0 0
    %1432 = vmatmul.mubr.bf16.gmra.mrb[0].mxu0 %v1356
    %v1433 = vpop.f32.mrb[0].mxu0
    %v1434 = vadd.f32 0.0, %v1433
    %v1435 = vpop.f32.mrb[0].mxu0
    %v1436 = vpop.f32.mrb[0].mxu0
    %v1437 = vadd.f32 0.0, %v1436
    %v1438 = vpop.f32.mrb[0].mxu0
    %1439 = vmatprep.mubr.bf16.mxu0 0
    %1440 = vmatmul.mubr.bf16.gmra.mrb[0].mxu0 %v1359
    %v1441 = vpop.f32.mrb[0].mxu0
    %v1442 = vadd.f32 0.0, %v1441
    %v1443 = vpop.f32.mrb[0].mxu0
    %v1444 = vpop.f32.mrb[0].mxu0
    %v1445 = vadd.f32 0.0, %v1444
    %v1446 = vpop.f32.mrb[0].mxu0
    %1447 = vmatprep.mubr.bf16.mxu0 0
    %1448 = vmatmul.mubr.bf16.gmra.mrb[0].mxu0 %v1362
    %v1449 = vpop.f32.mrb[0].mxu0
    %v1450 = vadd.f32 0.0, %v1449
    %v1451 = vpop.f32.mrb[0].mxu0
    %v1452 = vpop.f32.mrb[0].mxu0
    %v1453 = vadd.f32 0.0, %v1452
    %v1454 = vpop.f32.mrb[0].mxu0
    %1455 = vmatprep.mubr.bf16.mxu0 0
    %1456 = vmatmul.mubr.bf16.gmra.mrb[0].mxu0 %v1365
    %v1457 = vpop.f32.mrb[0].mxu0
    %v1458 = vadd.f32 0.0, %v1457
    %v1459 = vpop.f32.mrb[0].mxu0
    %v1460 = vpop.f32.mrb[0].mxu0
    %v1461 = vadd.f32 0.0, %v1460
    %v1462 = vpop.f32.mrb[0].mxu0
    %1463 = vdwg.mxu0
    %v1464 = vadd.f32 %v1203, %v1402
    %v1465 = vadd.f32 %v1204, %v1405
    %v1466 = vadd.f32 %v1205, %v1410
    %v1467 = vadd.f32 %v1206, %v1413
    %v1468 = vadd.f32 %v1207, %v1418
    %v1469 = vadd.f32 %v1208, %v1421
    %v1470 = vadd.f32 %v1209, %v1426
    %v1471 = vadd.f32 %v1210, %v1429
    %v1472 = vadd.f32 %v1211, %v1434
    %v1473 = vadd.f32 %v1212, %v1437
    %v1474 = vadd.f32 %v1213, %v1442
    %v1475 = vadd.f32 %v1214, %v1445
    %v1476 = vadd.f32 %v1215, %v1450
    %v1477 = vadd.f32 %v1216, %v1453
    %v1478 = vadd.f32 %v1217, %v1458
    %v1479 = vadd.f32 %v1218, %v1461
    %v1480 = vlaneseq
    %v1481 = vshrl.u32 %v1480, 7
    %v1482 = vadd.s32 %v1481, 8
    %v1483 = vlaneseq
    %v1484 = vshrl.u32 %v1483, 7
    %v1485 = vsub.s32 0, %v1484
    %v1486 = vrot.slane %v25, %v1485
    %vm1487 = vcmp.lt.s32.totalorder %v1481, %v1486
    %vm1488 = vcmp.lt.s32.totalorder %v1482, %v1486
    %v1489 = vsel %vm1487, 0.0, -1e+30
    %v1490 = vsel %vm1488, 0.0, -1e+30
    %v1491 = vadd.f32 %v1464, %v1489
    %v1492 = vadd.f32 %v1465, %v1490
    %v1493 = vadd.f32 %v1466, %v1489
    %v1494 = vadd.f32 %v1467, %v1490
    %v1495 = vadd.f32 %v1468, %v1489
    %v1496 = vadd.f32 %v1469, %v1490
    %v1497 = vadd.f32 %v1470, %v1489
    %v1498 = vadd.f32 %v1471, %v1490
    %v1499 = vadd.f32 %v1472, %v1489
    %v1500 = vadd.f32 %v1473, %v1490
    %v1501 = vadd.f32 %v1474, %v1489
    %v1502 = vadd.f32 %v1475, %v1490
    %v1503 = vadd.f32 %v1476, %v1489
    %v1504 = vadd.f32 %v1477, %v1490
    %v1505 = vadd.f32 %v1478, %v1489
    %v1506 = vadd.f32 %v1479, %v1490
    %v1507 = vmax.f32 %v1491, %v1492
    %v1508 = vrot.slane %v1507, 4
    %v1509 = vmax.f32 %v1507, %v1508
    %v1510 = vrot.slane %v1509, 2
    %v1511 = vmax.f32 %v1509, %v1510
    %v1512 = vrot.slane %v1511, 1
    %v1513 = vmax.f32 %v1511, %v1512
    %v1514 = vmax.f32 %v1493, %v1494
    %v1515 = vrot.slane %v1514, 4
    %v1516 = vmax.f32 %v1514, %v1515
    %v1517 = vrot.slane %v1516, 2
    %v1518 = vmax.f32 %v1516, %v1517
    %v1519 = vrot.slane %v1518, 1
    %v1520 = vmax.f32 %v1518, %v1519
    %v1521 = vmax.f32 %v1495, %v1496
    %v1522 = vrot.slane %v1521, 4
    %v1523 = vmax.f32 %v1521, %v1522
    %v1524 = vrot.slane %v1523, 2
    %v1525 = vmax.f32 %v1523, %v1524
    %v1526 = vrot.slane %v1525, 1
    %v1527 = vmax.f32 %v1525, %v1526
    %v1528 = vmax.f32 %v1497, %v1498
    %v1529 = vrot.slane %v1528, 4
    %v1530 = vmax.f32 %v1528, %v1529
    %v1531 = vrot.slane %v1530, 2
    %v1532 = vmax.f32 %v1530, %v1531
    %v1533 = vrot.slane %v1532, 1
    %v1534 = vmax.f32 %v1532, %v1533
    %v1535 = vmax.f32 %v1499, %v1500
    %v1536 = vrot.slane %v1535, 4
    %v1537 = vmax.f32 %v1535, %v1536
    %v1538 = vrot.slane %v1537, 2
    %v1539 = vmax.f32 %v1537, %v1538
    %v1540 = vrot.slane %v1539, 1
    %v1541 = vmax.f32 %v1539, %v1540
    %v1542 = vmax.f32 %v1501, %v1502
    %v1543 = vrot.slane %v1542, 4
    %v1544 = vmax.f32 %v1542, %v1543
    %v1545 = vrot.slane %v1544, 2
    %v1546 = vmax.f32 %v1544, %v1545
    %v1547 = vrot.slane %v1546, 1
    %v1548 = vmax.f32 %v1546, %v1547
    %v1549 = vmax.f32 %v1503, %v1504
    %v1550 = vrot.slane %v1549, 4
    %v1551 = vmax.f32 %v1549, %v1550
    %v1552 = vrot.slane %v1551, 2
    %v1553 = vmax.f32 %v1551, %v1552
    %v1554 = vrot.slane %v1553, 1
    %v1555 = vmax.f32 %v1553, %v1554
    %v1556 = vmax.f32 %v1505, %v1506
    %v1557 = vrot.slane %v1556, 4
    %v1558 = vmax.f32 %v1556, %v1557
    %v1559 = vrot.slane %v1558, 2
    %v1560 = vmax.f32 %v1558, %v1559
    %v1561 = vrot.slane %v1560, 1
    %v1562 = vmax.f32 %v1560, %v1561
    %v1563 = vmax.f32 %v1513, -1e+30
    %v1564 = vmax.f32 %v1520, -1e+30
    %v1565 = vmax.f32 %v1527, -1e+30
    %v1566 = vmax.f32 %v1534, -1e+30
    %v1567 = vmax.f32 %v1541, -1e+30
    %v1568 = vmax.f32 %v1548, -1e+30
    %v1569 = vmax.f32 %v1555, -1e+30
    %v1570 = vmax.f32 %v1562, -1e+30
    %v1571 = vld [vmem:[%s2] sm:$0x1]
    %v1573 = vlaneseq
    %v1574 = vshrl.u32 %v1573, 7
    %v1575 = vsub.s32 0, %v1574
    %v1576 = vrot.slane %v1571, %v1575
    %v1578 = vadd.f32 %v1563, %v1576
    %v1579 = vadd.f32 %v1564, %v1576
    %v1580 = vadd.f32 %v1565, %v1576
    %v1581 = vadd.f32 %v1566, %v1576
    %v1582 = vadd.f32 %v1567, %v1576
    %v1583 = vadd.f32 %v1568, %v1576
    %v1584 = vadd.f32 %v1569, %v1576
    %v1585 = vadd.f32 %v1570, %v1576
    %v1586 = vmax.f32 %v1578, 0.0
    %v1587 = vmax.f32 %v1579, 0.0
    %v1588 = vmax.f32 %v1580, 0.0
    %v1589 = vmax.f32 %v1581, 0.0
    %v1590 = vmax.f32 %v1582, 0.0
    %v1591 = vmax.f32 %v1583, 0.0
    %v1592 = vmax.f32 %v1584, 0.0
    %v1593 = vmax.f32 %v1585, 0.0
    %v1594 = vpack.c.bf16 %v1586, %v1586
    %v1595 = vpack.c.bf16 %v1587, %v1587
    %v1596 = vpack.c.bf16 %v1588, %v1588
    %v1597 = vpack.c.bf16 %v1589, %v1589
    %v1598 = vpack.c.bf16 %v1590, %v1590
    %v1599 = vpack.c.bf16 %v1591, %v1591
    %v1600 = vpack.c.bf16 %v1592, %v1592
    %v1601 = vpack.c.bf16 %v1593, %v1593
    %v1602 = vld [vmem:[%s4] sm:$0xf]
    %v1603 = vld [vmem:[%s4 + $0x4] sm:$0xf]
    %v1604 = vld [vmem:[%s4 + $0x8] sm:$0xf]
    %v1605 = vld [vmem:[%s4 + $0xc] sm:$0xf]
    %v1606 = vld [vmem:[%s4 + $0x10] sm:$0xf]
    %v1607 = vld [vmem:[%s4 + $0x14] sm:$0xf]
    %v1608 = vld [vmem:[%s4 + $0x18] sm:$0xf]
    %v1609 = vld [vmem:[%s4 + $0x1c] sm:$0xf]
    %v1610 = vld [vmem:[%s4 + $0x20] sm:$0xf]
    %v1611 = vld [vmem:[%s4 + $0x24] sm:$0xf]
    %v1612 = vld [vmem:[%s4 + $0x28] sm:$0xf]
    %v1613 = vld [vmem:[%s4 + $0x2c] sm:$0xf]
    %v1614 = vld [vmem:[%s4 + $0x30] sm:$0xf]
    %v1615 = vld [vmem:[%s4 + $0x34] sm:$0xf]
    %v1616 = vld [vmem:[%s4 + $0x38] sm:$0xf]
    %v1617 = vld [vmem:[%s4 + $0x3c] sm:$0xf]
    %v1618 = vld [vmem:[%s5] sm:$0x1]
    %v1620 = vlaneseq
    %v1621 = vshrl.u32 %v1620, 7
    %v1622 = vsub.s32 0, %v1621
    %v1623 = vrot.slane %v1618, %v1622
    %v1633 = vunpack.c.l.b16 %v1594
    %v1634 = vunpack.c.l.b16 %v1595
    %v1635 = vunpack.c.l.b16 %v1596
    %v1636 = vunpack.c.l.b16 %v1597
    %v1637 = vunpack.c.l.b16 %v1598
    %v1638 = vunpack.c.l.b16 %v1599
    %v1639 = vunpack.c.l.b16 %v1600
    %v1640 = vunpack.c.l.b16 %v1601
    %v1641 = vrot.slane %v1634, 7
    %vm1642 = vcmask 1041409
    %v1643 = vsel %vm1642, %v1641, %v1633
    %v1644 = vrot.slane %v1635, 6
    %vm1645 = vcmask 1042434
    %v1646 = vsel %vm1645, %v1644, %v1643
    %v1647 = vrot.slane %v1636, 5
    %vm1648 = vcmask 1043459
    %v1649 = vsel %vm1648, %v1647, %v1646
    %v1650 = vrot.slane %v1637, 4
    %vm1651 = vcmask 1044484
    %v1652 = vsel %vm1651, %v1650, %v1649
    %v1653 = vrot.slane %v1638, 3
    %vm1654 = vcmask 1045509
    %v1655 = vsel %vm1654, %v1653, %v1652
    %v1656 = vrot.slane %v1639, 2
    %vm1657 = vcmask 1046534
    %v1658 = vsel %vm1657, %v1656, %v1655
    %v1659 = vrot.slane %v1640, 1
    %vm1660 = vcmask 1047559
    %v1661 = vsel %vm1660, %v1659, %v1658
    %v1662 = vpack.c.b16 %v1661, %v1661
    %v1680 = vunpack.c.l.b16 %v1602
    %v1681 = vunpack.c.l.b16 %v1603
    %v1682 = vunpack.c.l.b16 %v1604
    %v1683 = vunpack.c.l.b16 %v1605
    %v1684 = vunpack.c.l.b16 %v1606
    %v1685 = vunpack.c.l.b16 %v1607
    %v1686 = vunpack.c.l.b16 %v1608
    %v1687 = vunpack.c.l.b16 %v1609
    %v1688 = vunpack.c.l.b16 %v1610
    %v1689 = vunpack.c.l.b16 %v1611
    %v1690 = vunpack.c.l.b16 %v1612
    %v1691 = vunpack.c.l.b16 %v1613
    %v1692 = vunpack.c.l.b16 %v1614
    %v1693 = vunpack.c.l.b16 %v1615
    %v1694 = vunpack.c.l.b16 %v1616
    %v1695 = vunpack.c.l.b16 %v1617
    %v1696 = vpack.c.b16 %v1681, %v1680
    %v1697 = vpack.c.b16 %v1683, %v1682
    %v1698 = vpack.c.b16 %v1685, %v1684
    %v1699 = vpack.c.b16 %v1687, %v1686
    %v1700 = vpack.c.b16 %v1689, %v1688
    %v1701 = vpack.c.b16 %v1691, %v1690
    %v1702 = vpack.c.b16 %v1693, %v1692
    %v1703 = vpack.c.b16 %v1695, %v1694
    %1712 = vmatprep.subr.bf16.mxu0 0
    %1713 = vmatpush1.bf16.msra.mxu0 %v1696
    %1714 = vmatprep.subr.bf16.mxu0 0
    %1715 = vmatpush1.bf16.msra.mxu0 %v1697
    %1716 = vmatprep.subr.bf16.mxu0 0
    %1717 = vmatpush1.bf16.msra.mxu0 %v1698
    %1718 = vmatprep.subr.bf16.mxu0 0
    %1719 = vmatpush1.bf16.msra.mxu0 %v1699
    %1720 = vmatprep.subr.bf16.mxu0 0
    %1721 = vmatpush1.bf16.msra.mxu0 %v1700
    %1722 = vmatprep.subr.bf16.mxu0 0
    %1723 = vmatpush1.bf16.msra.mxu0 %v1701
    %1724 = vmatprep.subr.bf16.mxu0 0
    %1725 = vmatpush1.bf16.msra.mxu0 %v1702
    %1726 = vmatprep.subr.bf16.mxu0 0
    %1727 = vmatpush1.bf16.msra.mxu0 %v1703
    %1728 = vmatprep.subr.bf16.mxu0 0
    %1729 = vmatpush1.bf16.msra.mxu0 0
    %1730 = vmatprep.subr.bf16.mxu0 0
    %1731 = vmatpush1.bf16.msra.mxu0 0
    %1732 = vmatprep.subr.bf16.mxu0 0
    %1733 = vmatpush1.bf16.msra.mxu0 0
    %1734 = vmatprep.subr.bf16.mxu0 0
    %1735 = vmatpush1.bf16.msra.mxu0 0
    %1736 = vmatprep.subr.bf16.mxu0 0
    %1737 = vmatpush1.bf16.msra.mxu0 0
    %1738 = vmatprep.subr.bf16.mxu0 0
    %1739 = vmatpush1.bf16.msra.mxu0 0
    %1740 = vmatprep.subr.bf16.mxu0 0
    %1741 = vmatpush1.bf16.msra.mxu0 0
    %1742 = vmatprep.subr.bf16.mxu0 0
    %1743 = vmatpush1.bf16.msra.mxu0 0
    %1744 = vmatprep.mubr.bf16.mxu0 0
    %1745 = vmatmul.mubr.bf16.gmra.mrb[0].mxu0 %v1662
    %v1746 = vpop.f32.mrb[0].mxu0
    %v1747 = vadd.f32 %v1623, %v1746
    %v1748 = vpop.f32.mrb[0].mxu0
    %v1749 = vpop.f32.mrb[0].mxu0
    %v1750 = vpop.f32.mrb[0].mxu0
    %1751 = vdwg.mxu0
    %1752 = vst [vmem:[#allocation2] sm:$0xff] %v1747
    // Predicated region
    $region26: #{tpu_custom_call.1} parent=1 // pred_check
      _
    $region27: #{tpu_custom_call.1} parent=1 // pred_check_branch
      %1754 = sbr.rel (0) target = $region29
    $region28: #{tpu_custom_call.1} parent=1 // pred_region
      %s1756 = ssub.s32 128, 128
      %1757 = vsyncadd [#allocation3], %s1756
      %s1759 = sshll.u32 [#allocation2], 4
      %s1760 = int_to_ptr.vmem [resolvable:$true] %s1759
      %1762 = dma.vmem_to_hbm [thread:$0]  %s1760, 128, %s6, [#allocation3]
    $region29: #{tpu_custom_call.1} parent=1 // pred_fallthru
      _
    // Predicated region
    $region30: #{tpu_custom_call.1} parent=1 // pred_check
      _
    $region31: #{tpu_custom_call.1} parent=1 // pred_check_branch
      %1764 = sbr.rel (0) target = $region33
    $region32: #{tpu_custom_call.1} parent=1 // pred_region
      %1765 = dma.done [#allocation3], 128
    $region33: #{tpu_custom_call.1} parent=1 // pred_fallthru
      _
    %1766 = vsyncpa [#allocation3], 1

</llo_original>
